<compile_context>
chip_gen: v7x
topology: tpu7x:2x2x1
jax: 0.10.0
libtpu: 0.0.40
codegen_flags: <defaults>
</compile_context>

<pallas_src>
import functools

import jax
import jax.numpy as jnp
from jax import lax
from jax.experimental import pallas as pl
from jax.experimental.pallas import tpu as pltpu

LANE = 128
SUBLANE = 8


def _round_up(n, m):
    return ((n + m - 1) // m) * m


def graphnet_kernel(np_pad, dp_pad, ep_pad,
                    a_ref, x_ref, w1_ref, b1_ref, w2_ref, b2_ref,
                    wpq_ref, bpq_ref, wf_ref, bf_ref, src_ref, dst_ref,
                    out_ref):
    f32 = jnp.float32
    bf16 = jnp.bfloat16

    a = a_ref[...]                                              # [NP, NP] bf16

    # --- GCNConv 1: relu(A_norm @ (X @ W1) + b1) -------------------------------------
    xw = jnp.dot(x_ref[...], w1_ref[...], preferred_element_type=f32)
    h = jnp.dot(a, xw.astype(bf16), preferred_element_type=f32) + b1_ref[...]
    h = jnp.maximum(h, 0.0)

    # --- GCNConv 2: relu(A_norm @ (H @ W2) + b2) -------------------------------------
    hw = jnp.dot(h.astype(bf16), w2_ref[...], preferred_element_type=f32)
    h2 = jnp.dot(a, hw.astype(bf16), preferred_element_type=f32) + b2_ref[...]
    h2 = jnp.maximum(h2, 0.0)

    # --- Edge MLP reassociated to node granularity, fused weights ---------------------
    # PQ = H2 @ [Wl1a | Wl1b] + [bl1 | 0]   -> [NP, 2*DP], one 256-wide MXU pass.
    pq = jnp.dot(h2.astype(bf16), wpq_ref[...], preferred_element_type=f32) + bpq_ref[...]
    pqb = pq.astype(bf16)

    # --- One-hot MXU gather of src/dst rows (no serialized per-edge loop) -------------
    node_iota = lax.broadcasted_iota(jnp.int32, (ep_pad, np_pad), 1)
    oh_s = jnp.where(node_iota == src_ref[...], 1.0, 0.0).astype(bf16)   # [EP, NP]
    oh_d = jnp.where(node_iota == dst_ref[...], 1.0, 0.0).astype(bf16)   # [EP, NP]
    z = (jnp.dot(oh_s, pqb[:, :dp_pad], preferred_element_type=f32) +
         jnp.dot(oh_d, pqb[:, dp_pad:], preferred_element_type=f32))     # P[s]+bl1 + Q[d]
    z = jnp.maximum(z, 0.0)

    # --- lin_final + log_softmax ------------------------------------------------------
    # wf pad columns are 0 and bf pad lanes are -1e30 (f32), so padded class lanes are
    # already masked; no iota/where needed here.
    logits = jnp.dot(z.astype(bf16), wf_ref[...], preferred_element_type=f32) + bf_ref[...]
    m = jnp.max(logits, axis=1, keepdims=True)
    sh = logits - m
    lse = jnp.log(jnp.sum(jnp.exp(sh), axis=1, keepdims=True))
    out_ref[...] = sh - lse                                     # unmasked [EP, 128] store


def graph_network_forward(a_norm, x, params, edge_index, num_classes):
    """params = (w1, b1, w2, b2, wl1, bl1, wf, bf) in f32, unpadded."""
    w1, b1, w2, b2, wl1, bl1, wf, bf = params
    n, in_feat = x.shape
    d_model = w1.shape[1]
    e = edge_index.shape[1]

    NP = _round_up(max(n, SUBLANE), LANE)     # padded node count (MXU contraction dim)
    FP = _round_up(in_feat, LANE)
    DP = _round_up(d_model, LANE)
    CP = _round_up(num_classes, LANE)         # lane-dense output
    EP = _round_up(max(e, SUBLANE), SUBLANE)  # padded edge count (matmul M dim)

    bf16 = jnp.bfloat16
    f32 = jnp.float32

    def pad2(v, r, c, dtype):
        return jnp.pad(v, ((0, r - v.shape[0]), (0, c - v.shape[1]))).astype(dtype)

    a_p = pad2(a_norm, NP, NP, bf16)
    x_p = pad2(x, NP, FP, bf16)
    w1_p = pad2(w1, FP, DP, bf16)
    b1_p = pad2(b1, 1, DP, f32)
    w2_p = pad2(w2, DP, DP, bf16)
    b2_p = pad2(b2, 1, DP, f32)

    # Fused lin1 weight [DP, 2*DP]: columns [0:DP) = Wl1a, [DP:2DP) = Wl1b.
    wpq = jnp.zeros((DP, 2 * DP), f32)
    wpq = wpq.at[:d_model, :d_model].set(wl1[:d_model].astype(f32))
    wpq = wpq.at[:d_model, DP:DP + d_model].set(wl1[d_model:].astype(f32))
    wpq_p = wpq.astype(bf16)
    # bl1 folded into the P half of the fused matmul (Q half gets 0).
    bpq_p = jnp.zeros((1, 2 * DP), f32).at[:, :d_model].set(bl1.astype(f32))

    wf_p = pad2(wf, DP, CP, bf16)
    # Class-pad mask folded into the bias padding (-1e30, kept in f32 — never bf16).
    bf_p = jnp.full((1, CP), -1e30, f32).at[:, :num_classes].set(bf.astype(f32))

    ei = edge_index.astype(jnp.int32)
    src_p = jnp.pad(ei[0], (0, EP - e)).reshape(EP, 1)
    dst_p = jnp.pad(ei[1], (0, EP - e)).reshape(EP, 1)

    inputs = (a_p, x_p, w1_p, b1_p, w2_p, b2_p, wpq_p, bpq_p, wf_p, bf_p, src_p, dst_p)

    # VMEM budget from hardware info with headroom (don't hardcode v7x's full 64 MiB).
    try:
        info = pltpu.get_tpu_info()
        vmem_cap = getattr(info, "vmem_capacity_bytes", None) or (64 * 1024 * 1024)
    except Exception:
        vmem_cap = 64 * 1024 * 1024
    vmem_budget = int(vmem_cap * 3 // 4)

    kernel = functools.partial(graphnet_kernel, NP, DP, EP)
    vmem_spec = pl.BlockSpec(memory_space=pltpu.MemorySpace.VMEM)

    out = pl.pallas_call(
        kernel,
        out_shape=jax.ShapeDtypeStruct((EP, CP), f32),
        in_specs=[vmem_spec] * len(inputs),
        out_specs=vmem_spec,
        compiler_params=pltpu.CompilerParams(vmem_limit_bytes=vmem_budget),
    )(*inputs)

    return out[:e, :num_classes]


def build_normalized_adjacency(edge_index, num_nodes):
    """Dense D^-1/2 (A + I) D^-1/2 with A[t, s] = #edges s->t (GCNConv semantics)."""
    src = edge_index[0]
    dst = edge_index[1]
    adj = jnp.zeros((num_nodes, num_nodes), jnp.float32)
    adj = adj.at[dst, src].add(1.0)                      # messages flow src -> dst
    adj = adj + jnp.eye(num_nodes, dtype=jnp.float32)    # add self loops
    deg = jnp.sum(adj, axis=1)                           # in-degree incl. self loop
    dinv = 1.0 / jnp.sqrt(deg)
    return dinv[:, None] * adj * dinv[None, :]


if __name__ == "__main__":
    # Small deterministic problem
    N = 16          # nodes
    E = 32          # edges
    IN_FEAT = 8     # GCNConv(8, d_model)
    D_MODEL = 32
    NUM_CLASSES = 4

    key = jax.random.PRNGKey(0)
    keys = jax.random.split(key, 12)

    x = jax.random.normal(keys[0], (N, IN_FEAT), jnp.float32)
    edge_index = jax.random.randint(keys[1], (2, E), 0, N, jnp.int32)

    def init(k, shape, scale=0.1):
        return scale * jax.random.normal(k, shape, jnp.float32)

    w1 = init(keys[2], (IN_FEAT, D_MODEL))
    b1 = init(keys[3], (1, D_MODEL))
    w2 = init(keys[4], (D_MODEL, D_MODEL))
    b2 = init(keys[5], (1, D_MODEL))
    wl1 = init(keys[6], (2 * D_MODEL, D_MODEL))      # Linear(d_model*2, d_model)
    bl1 = init(keys[7], (1, D_MODEL))
    wf = init(keys[8], (D_MODEL, NUM_CLASSES))       # Linear(d_model, num_classes)
    bf = init(keys[9], (1, NUM_CLASSES))

    a_norm = build_normalized_adjacency(edge_index, N)
    params = (w1, b1, w2, b2, wl1, bl1, wf, bf)

    log_probs = graph_network_forward(a_norm, x, params, edge_index, NUM_CLASSES)
    log_probs = jax.block_until_ready(log_probs)

    # pure-JAX f32 reference of the original forward
    def reference(a, xf, ei):
        h = jax.nn.relu(a @ (xf @ w1) + b1)
        h2 = jax.nn.relu(a @ (h @ w2) + b2)
        x1 = h2[ei[0]]
        x2 = h2[ei[1]]
        z = jax.nn.relu(jnp.concatenate([x1, x2], axis=1) @ wl1 + bl1)
        logits = z @ wf + bf
        return jax.nn.log_softmax(logits, axis=1)

    ref = reference(a_norm, x, edge_index)

    assert log_probs.shape == (E, NUM_CLASSES)
    # rows of log_softmax must exponentiate-sum to 1
    assert bool(jnp.allclose(jnp.sum(jnp.exp(log_probs), axis=1), 1.0, atol=1e-4))
    # matches the f32 reference up to bf16 matmul rounding
    assert bool(jnp.allclose(log_probs, ref, atol=5e-2, rtol=0.0))
    print("KERNEL_OK")
</pallas_src>

<mosaic_0001>
module attributes {stable_mosaic.version = 11 : i64} {
  func.func @graphnet_kernel(%arg0: memref<128x128xbf16, #tpu.memory_space<vmem>>, %arg1: memref<128x128xbf16, #tpu.memory_space<vmem>>, %arg2: memref<128x128xbf16, #tpu.memory_space<vmem>>, %arg3: memref<1x128xf32, #tpu.memory_space<vmem>>, %arg4: memref<128x128xbf16, #tpu.memory_space<vmem>>, %arg5: memref<1x128xf32, #tpu.memory_space<vmem>>, %arg6: memref<128x256xbf16, #tpu.memory_space<vmem>>, %arg7: memref<1x256xf32, #tpu.memory_space<vmem>>, %arg8: memref<128x128xbf16, #tpu.memory_space<vmem>>, %arg9: memref<1x128xf32, #tpu.memory_space<vmem>>, %arg10: memref<32x1xi32, #tpu.memory_space<vmem>>, %arg11: memref<32x1xi32, #tpu.memory_space<vmem>>, %arg12: memref<32x128xf32, #tpu.memory_space<vmem>>) attributes {dimension_semantics = [], scalar_prefetch = 0 : i64, scratch_operands = 0 : i64, tpu.core_type = #tpu.core_type<tc>} {
    %c0 = arith.constant 0 : index
    %c0_0 = arith.constant 0 : index
    %0 = vector.load %arg0[%c0, %c0_0] : memref<128x128xbf16, #tpu.memory_space<vmem>>, vector<128x128xbf16>
    %c0_1 = arith.constant 0 : index
    %c0_2 = arith.constant 0 : index
    %1 = vector.load %arg1[%c0_1, %c0_2] : memref<128x128xbf16, #tpu.memory_space<vmem>>, vector<128x128xbf16>
    %c0_3 = arith.constant 0 : index
    %c0_4 = arith.constant 0 : index
    %2 = vector.load %arg2[%c0_3, %c0_4] : memref<128x128xbf16, #tpu.memory_space<vmem>>, vector<128x128xbf16>
    %cst = arith.constant dense<0.000000e+00> : vector<128x128xf32>
    %3 = tpu.matmul %1, %2, %cst {dimension_numbers = #tpu.dot_dimension_numbers<[1], [0], [0], [1], [0, 0, 1, 1], [], []>} : vector<128x128xbf16>, vector<128x128xbf16>, vector<128x128xf32> -> vector<128x128xf32>
    %4 = arith.truncf %3 : vector<128x128xf32> to vector<128x128xbf16>
    %cst_5 = arith.constant dense<0.000000e+00> : vector<128x128xf32>
    %5 = tpu.matmul %0, %4, %cst_5 {dimension_numbers = #tpu.dot_dimension_numbers<[1], [0], [0], [1], [0, 0, 1, 1], [], []>} : vector<128x128xbf16>, vector<128x128xbf16>, vector<128x128xf32> -> vector<128x128xf32>
    %c0_6 = arith.constant 0 : index
    %c0_7 = arith.constant 0 : index
    %6 = vector.load %arg3[%c0_6, %c0_7] : memref<1x128xf32, #tpu.memory_space<vmem>>, vector<1x128xf32>
    %7 = vector.broadcast %6 : vector<1x128xf32> to vector<128x128xf32>
    %8 = arith.addf %5, %7 : vector<128x128xf32>
    %cst_8 = arith.constant 0.000000e+00 : f32
    %9 = vector.broadcast %cst_8 : f32 to vector<128x128xf32>
    %10 = arith.maximumf %8, %9 : vector<128x128xf32>
    %11 = arith.truncf %10 : vector<128x128xf32> to vector<128x128xbf16>
    %c0_9 = arith.constant 0 : index
    %c0_10 = arith.constant 0 : index
    %12 = vector.load %arg4[%c0_9, %c0_10] : memref<128x128xbf16, #tpu.memory_space<vmem>>, vector<128x128xbf16>
    %cst_11 = arith.constant dense<0.000000e+00> : vector<128x128xf32>
    %13 = tpu.matmul %11, %12, %cst_11 {dimension_numbers = #tpu.dot_dimension_numbers<[1], [0], [0], [1], [0, 0, 1, 1], [], []>} : vector<128x128xbf16>, vector<128x128xbf16>, vector<128x128xf32> -> vector<128x128xf32>
    %14 = arith.truncf %13 : vector<128x128xf32> to vector<128x128xbf16>
    %cst_12 = arith.constant dense<0.000000e+00> : vector<128x128xf32>
    %15 = tpu.matmul %0, %14, %cst_12 {dimension_numbers = #tpu.dot_dimension_numbers<[1], [0], [0], [1], [0, 0, 1, 1], [], []>} : vector<128x128xbf16>, vector<128x128xbf16>, vector<128x128xf32> -> vector<128x128xf32>
    %c0_13 = arith.constant 0 : index
    %c0_14 = arith.constant 0 : index
    %16 = vector.load %arg5[%c0_13, %c0_14] : memref<1x128xf32, #tpu.memory_space<vmem>>, vector<1x128xf32>
    %17 = vector.broadcast %16 : vector<1x128xf32> to vector<128x128xf32>
    %18 = arith.addf %15, %17 : vector<128x128xf32>
    %cst_15 = arith.constant 0.000000e+00 : f32
    %19 = vector.broadcast %cst_15 : f32 to vector<128x128xf32>
    %20 = arith.maximumf %18, %19 : vector<128x128xf32>
    %21 = arith.truncf %20 : vector<128x128xf32> to vector<128x128xbf16>
    %c0_16 = arith.constant 0 : index
    %c0_17 = arith.constant 0 : index
    %22 = vector.load %arg6[%c0_16, %c0_17] : memref<128x256xbf16, #tpu.memory_space<vmem>>, vector<128x256xbf16>
    %cst_18 = arith.constant dense<0.000000e+00> : vector<128x256xf32>
    %23 = tpu.matmul %21, %22, %cst_18 {dimension_numbers = #tpu.dot_dimension_numbers<[1], [0], [0], [1], [0, 0, 1, 1], [], []>} : vector<128x128xbf16>, vector<128x256xbf16>, vector<128x256xf32> -> vector<128x256xf32>
    %c0_19 = arith.constant 0 : index
    %c0_20 = arith.constant 0 : index
    %24 = vector.load %arg7[%c0_19, %c0_20] : memref<1x256xf32, #tpu.memory_space<vmem>>, vector<1x256xf32>
    %25 = vector.broadcast %24 : vector<1x256xf32> to vector<128x256xf32>
    %26 = arith.addf %23, %25 : vector<128x256xf32>
    %27 = arith.truncf %26 : vector<128x256xf32> to vector<128x256xbf16>
    %28 = tpu.iota {dimensions = array<i32: 1>} : vector<32x128xi32>
    %c0_21 = arith.constant 0 : index
    %c0_22 = arith.constant 0 : index
    %29 = vector.load %arg10[%c0_21, %c0_22] : memref<32x1xi32, #tpu.memory_space<vmem>>, vector<32x1xi32>
    %30 = vector.broadcast %29 : vector<32x1xi32> to vector<32x128xi32>
    %31 = arith.cmpi eq, %28, %30 : vector<32x128xi32>
    %cst_23 = arith.constant 1.000000e+00 : f32
    %cst_24 = arith.constant 0.000000e+00 : f32
    %32 = vector.broadcast %cst_23 : f32 to vector<32x128xf32>
    %33 = vector.broadcast %cst_24 : f32 to vector<32x128xf32>
    %34 = arith.select %31, %32, %33 : vector<32x128xi1>, vector<32x128xf32>
    %35 = arith.truncf %34 : vector<32x128xf32> to vector<32x128xbf16>
    %c0_25 = arith.constant 0 : index
    %c0_26 = arith.constant 0 : index
    %36 = vector.load %arg11[%c0_25, %c0_26] : memref<32x1xi32, #tpu.memory_space<vmem>>, vector<32x1xi32>
    %37 = vector.broadcast %36 : vector<32x1xi32> to vector<32x128xi32>
    %38 = arith.cmpi eq, %28, %37 : vector<32x128xi32>
    %cst_27 = arith.constant 1.000000e+00 : f32
    %cst_28 = arith.constant 0.000000e+00 : f32
    %39 = vector.broadcast %cst_27 : f32 to vector<32x128xf32>
    %40 = vector.broadcast %cst_28 : f32 to vector<32x128xf32>
    %41 = arith.select %38, %39, %40 : vector<32x128xi1>, vector<32x128xf32>
    %42 = arith.truncf %41 : vector<32x128xf32> to vector<32x128xbf16>
    %43 = vector.extract_strided_slice %27 {offsets = [0, 0], sizes = [128, 128], strides = [1, 1]} : vector<128x256xbf16> to vector<128x128xbf16>
    %cst_29 = arith.constant dense<0.000000e+00> : vector<32x128xf32>
    %44 = tpu.matmul %35, %43, %cst_29 {dimension_numbers = #tpu.dot_dimension_numbers<[1], [0], [0], [1], [0, 0, 1, 1], [], []>} : vector<32x128xbf16>, vector<128x128xbf16>, vector<32x128xf32> -> vector<32x128xf32>
    %45 = vector.extract_strided_slice %27 {offsets = [0, 128], sizes = [128, 128], strides = [1, 1]} : vector<128x256xbf16> to vector<128x128xbf16>
    %cst_30 = arith.constant dense<0.000000e+00> : vector<32x128xf32>
    %46 = tpu.matmul %42, %45, %cst_30 {dimension_numbers = #tpu.dot_dimension_numbers<[1], [0], [0], [1], [0, 0, 1, 1], [], []>} : vector<32x128xbf16>, vector<128x128xbf16>, vector<32x128xf32> -> vector<32x128xf32>
    %47 = arith.addf %44, %46 : vector<32x128xf32>
    %cst_31 = arith.constant 0.000000e+00 : f32
    %48 = vector.broadcast %cst_31 : f32 to vector<32x128xf32>
    %49 = arith.maximumf %47, %48 : vector<32x128xf32>
    %50 = arith.truncf %49 : vector<32x128xf32> to vector<32x128xbf16>
    %c0_32 = arith.constant 0 : index
    %c0_33 = arith.constant 0 : index
    %51 = vector.load %arg8[%c0_32, %c0_33] : memref<128x128xbf16, #tpu.memory_space<vmem>>, vector<128x128xbf16>
    %cst_34 = arith.constant dense<0.000000e+00> : vector<32x128xf32>
    %52 = tpu.matmul %50, %51, %cst_34 {dimension_numbers = #tpu.dot_dimension_numbers<[1], [0], [0], [1], [0, 0, 1, 1], [], []>} : vector<32x128xbf16>, vector<128x128xbf16>, vector<32x128xf32> -> vector<32x128xf32>
    %c0_35 = arith.constant 0 : index
    %c0_36 = arith.constant 0 : index
    %53 = vector.load %arg9[%c0_35, %c0_36] : memref<1x128xf32, #tpu.memory_space<vmem>>, vector<1x128xf32>
    %54 = vector.broadcast %53 : vector<1x128xf32> to vector<32x128xf32>
    %55 = arith.addf %52, %54 : vector<32x128xf32>
    %cst_37 = arith.constant dense<0xFF800000> : vector<32xf32>
    %56 = vector.multi_reduction <maximumf>, %55, %cst_37 [1] : vector<32x128xf32> to vector<32xf32>
    %57 = vector.shape_cast %56 : vector<32xf32> to vector<32x1xf32>
    %58 = vector.broadcast %57 : vector<32x1xf32> to vector<32x128xf32>
    %59 = arith.subf %55, %58 : vector<32x128xf32>
    %60 = math.exp %59 : vector<32x128xf32>
    %cst_38 = arith.constant dense<0.000000e+00> : vector<32xf32>
    %61 = vector.multi_reduction <add>, %60, %cst_38 [1] : vector<32x128xf32> to vector<32xf32>
    %62 = vector.shape_cast %61 : vector<32xf32> to vector<32x1xf32>
    %63 = math.log %62 : vector<32x1xf32>
    %64 = vector.broadcast %63 : vector<32x1xf32> to vector<32x128xf32>
    %65 = arith.subf %59, %64 : vector<32x128xf32>
    %c0_39 = arith.constant 0 : index
    %c0_40 = arith.constant 0 : index
    %66 = vector.load %arg12[%c0_39, %c0_40] : memref<32x128xf32, #tpu.memory_space<vmem>>, vector<32x128xf32>
    tpu.vector_store %arg12[%c0_39, %c0_40], %65 {strides = array<i32>} : memref<32x128xf32, #tpu.memory_space<vmem>>, vector<32x128xf32>,
    return
  }
}

</mosaic_0001>

<llo_original>
// kernel: tpu_custom_call.1
$region0: #{tpu_custom_call.1}
  #allocation0 [shape = 'u32[]', space=smem, size = 0x4, offset = 0x4, fixed_abs, tag = 'smem constant byte address 0x4 - core index']
  #allocation1 [shape = 'u32[144,128]{1,0:T(1,128)}', space=vmem, size = 0x12000, scoped, tag = 'internal scratch']
  %s0 = inlined_call_operand.vmem [shape: bf16[128,128], index: 0, kind: input, shape index: {}]
  %s1 = inlined_call_operand.hbm [shape: bf16[128,128], index: 1, kind: input, shape index: {}]
  %s2 = inlined_call_operand.hbm [shape: bf16[128,128], index: 2, kind: input, shape index: {}]
  %s3 = inlined_call_operand.vmem [shape: f32[1,128], index: 3, kind: input, shape index: {}]
  %s4 = inlined_call_operand.hbm [shape: bf16[128,128], index: 4, kind: input, shape index: {}]
  %s5 = inlined_call_operand.vmem [shape: f32[1,128], index: 5, kind: input, shape index: {}]
  %s6 = inlined_call_operand.hbm [shape: bf16[128,256], index: 6, kind: input, shape index: {}]
  %s7 = inlined_call_operand.vmem [shape: f32[1,256], index: 7, kind: input, shape index: {}]
  %s8 = inlined_call_operand.hbm [shape: bf16[128,128], index: 8, kind: input, shape index: {}]
  %s9 = inlined_call_operand.vmem [shape: f32[1,128], index: 9, kind: input, shape index: {}]
  %s10 = inlined_call_operand.vmem [shape: s32[32,1], index: 10, kind: input, shape index: {}]
  %s11 = inlined_call_operand.vmem [shape: s32[32,1], index: 11, kind: input, shape index: {}]
  %s12 = inlined_call_operand.hbm [shape: f32[32,128], index: 12, kind: output, shape index: {}]
  %s13 = sld [smem:[#allocation0]]
  $region78: #{tpu_custom_call.1} parent=0
    _
  %s15 = ssub.s32 1, %s13
  %s16 = scalar_select 0, %s15, %s13
  $region1: #{tpu_custom_call.1} parent=0
    #allocation2 [shape = 'u8[32768]{0}', space=vmem, size = 0x8000, scoped, tag = 'input window, operand 1, single buffered']
    #allocation3 [shape = 's32[1]{0}', space=sflag, size = 0x4, scoped, tag = 'scoped memory for tpu_custom_call.1']
    #allocation4 [shape = 's32[1]{0}', space=sflag, size = 0x4, scoped, tag = 'scoped memory for tpu_custom_call.1']
    #allocation5 [shape = 'u8[32768]{0}', space=vmem, size = 0x8000, scoped, tag = 'input window, operand 2, single buffered']
    #allocation6 [shape = 's32[1]{0}', space=sflag, size = 0x4, scoped, tag = 'scoped memory for tpu_custom_call.1']
    #allocation7 [shape = 'u8[32768]{0}', space=vmem, size = 0x8000, scoped, tag = 'input window, operand 4, single buffered']
    #allocation8 [shape = 'u8[65536]{0}', space=vmem, size = 0x10000, scoped, tag = 'input window, operand 6, single buffered']
    #allocation9 [shape = 's32[1]{0}', space=sflag, size = 0x4, scoped, tag = 'scoped memory for tpu_custom_call.1']
    #allocation10 [shape = 'u8[32768]{0}', space=vmem, size = 0x8000, scoped, tag = 'input window, operand 8, single buffered']
    #allocation11 [shape = 'u8[16384]{0}', space=vmem, size = 0x4000, scoped, tag = 'output window, operand 0, single buffered']
    %17 = vsyncpa [#allocation3], 0
    %18 = vsyncpa [#allocation6], 0
    %19 = vsyncpa [#allocation9], 0
    %20 = vsyncpa [#allocation4], 0
    // Predicated region
    $region2: #{tpu_custom_call.1} parent=1 // pred_check
      _
    $region3: #{tpu_custom_call.1} parent=1 // pred_check_branch
      %22 = sbr.rel (0) target = $region5
    $region4: #{tpu_custom_call.1} parent=1 // pred_region
      _
    $region5: #{tpu_custom_call.1} parent=1 // pred_fallthru
      _
    // Predicated region
    $region6: #{tpu_custom_call.1} parent=1 // pred_check
      _
    $region7: #{tpu_custom_call.1} parent=1 // pred_check_branch
      %24 = sbr.rel (0) target = $region9
    $region8: #{tpu_custom_call.1} parent=1 // pred_region
      %s26 = ssub.s32 1024, 1024
      %27 = vsyncadd [#allocation3], %s26
      %s28 = sshll.u32 [#allocation2], 4
      %s29 = int_to_ptr.vmem [resolvable:$true] %s28
      %34 = dma.hbm_to_vmem [thread:$0]  %s1, 1024, %s29, [#allocation3], 64, 64, 4
    $region9: #{tpu_custom_call.1} parent=1 // pred_fallthru
      _
    // Predicated region
    $region10: #{tpu_custom_call.1} parent=1 // pred_check
      _
    $region11: #{tpu_custom_call.1} parent=1 // pred_check_branch
      %36 = sbr.rel (0) target = $region13
    $region12: #{tpu_custom_call.1} parent=1 // pred_region
      %s38 = ssub.s32 1024, 1024
      %39 = vsyncadd [#allocation6], %s38
      %s40 = sshll.u32 [#allocation5], 4
      %s41 = int_to_ptr.vmem [resolvable:$true] %s40
      %46 = dma.hbm_to_vmem [thread:$0]  %s2, 1024, %s41, [#allocation6], 64, 64, 4
    $region13: #{tpu_custom_call.1} parent=1 // pred_fallthru
      _
    // Predicated region
    $region14: #{tpu_custom_call.1} parent=1 // pred_check
      _
    $region15: #{tpu_custom_call.1} parent=1 // pred_check_branch
      %48 = sbr.rel (0) target = $region17
    $region16: #{tpu_custom_call.1} parent=1 // pred_region
      _
    $region17: #{tpu_custom_call.1} parent=1 // pred_fallthru
      _
    // Predicated region
    $region18: #{tpu_custom_call.1} parent=1 // pred_check
      _
    $region19: #{tpu_custom_call.1} parent=1 // pred_check_branch
      %50 = sbr.rel (0) target = $region21
    $region20: #{tpu_custom_call.1} parent=1 // pred_region
      %s52 = ssub.s32 1024, 1024
      %53 = vsyncadd [#allocation6], %s52
      %s54 = sshll.u32 [#allocation7], 4
      %s55 = int_to_ptr.vmem [resolvable:$true] %s54
      %60 = dma.hbm_to_vmem [thread:$0]  %s4, 1024, %s55, [#allocation6], 64, 64, 4
    $region21: #{tpu_custom_call.1} parent=1 // pred_fallthru
      _
    // Predicated region
    $region22: #{tpu_custom_call.1} parent=1 // pred_check
      _
    $region23: #{tpu_custom_call.1} parent=1 // pred_check_branch
      %62 = sbr.rel (0) target = $region25
    $region24: #{tpu_custom_call.1} parent=1 // pred_region
      _
    $region25: #{tpu_custom_call.1} parent=1 // pred_fallthru
      _
    // Predicated region
    $region26: #{tpu_custom_call.1} parent=1 // pred_check
      _
    $region27: #{tpu_custom_call.1} parent=1 // pred_check_branch
      %64 = sbr.rel (0) target = $region29
    $region28: #{tpu_custom_call.1} parent=1 // pred_region
      %s66 = ssub.s32 2048, 2048
      %67 = vsyncadd [#allocation9], %s66
      %s68 = sshll.u32 [#allocation8], 4
      %s69 = int_to_ptr.vmem [resolvable:$true] %s68
      %74 = dma.hbm_to_vmem [thread:$0]  %s6, 2048, %s69, [#allocation9], 128, 128, 8
    $region29: #{tpu_custom_call.1} parent=1 // pred_fallthru
      _
    // Predicated region
    $region30: #{tpu_custom_call.1} parent=1 // pred_check
      _
    $region31: #{tpu_custom_call.1} parent=1 // pred_check_branch
      %76 = sbr.rel (0) target = $region33
    $region32: #{tpu_custom_call.1} parent=1 // pred_region
      _
    $region33: #{tpu_custom_call.1} parent=1 // pred_fallthru
      _
    // Predicated region
    $region34: #{tpu_custom_call.1} parent=1 // pred_check
      _
    $region35: #{tpu_custom_call.1} parent=1 // pred_check_branch
      %78 = sbr.rel (0) target = $region37
    $region36: #{tpu_custom_call.1} parent=1 // pred_region
      %s80 = ssub.s32 1024, 1024
      %81 = vsyncadd [#allocation9], %s80
      %s82 = sshll.u32 [#allocation10], 4
      %s83 = int_to_ptr.vmem [resolvable:$true] %s82
      %88 = dma.hbm_to_vmem [thread:$0]  %s8, 1024, %s83, [#allocation9], 64, 64, 4
    $region37: #{tpu_custom_call.1} parent=1 // pred_fallthru
      _
    // Predicated region
    $region38: #{tpu_custom_call.1} parent=1 // pred_check
      _
    $region39: #{tpu_custom_call.1} parent=1 // pred_check_branch
      %90 = sbr.rel (0) target = $region41
    $region40: #{tpu_custom_call.1} parent=1 // pred_region
      _
    $region41: #{tpu_custom_call.1} parent=1 // pred_fallthru
      _
    // Predicated region
    $region42: #{tpu_custom_call.1} parent=1 // pred_check
      _
    $region43: #{tpu_custom_call.1} parent=1 // pred_check_branch
      %92 = sbr.rel (0) target = $region45
    $region44: #{tpu_custom_call.1} parent=1 // pred_region
      _
    $region45: #{tpu_custom_call.1} parent=1 // pred_fallthru
      _
    // Predicated region
    $region46: #{tpu_custom_call.1} parent=1 // pred_check
      _
    $region47: #{tpu_custom_call.1} parent=1 // pred_check_branch
      %94 = sbr.rel (0) target = $region49
    $region48: #{tpu_custom_call.1} parent=1 // pred_region
      _
    $region49: #{tpu_custom_call.1} parent=1 // pred_fallthru
      _
    // Predicated region
    $region50: #{tpu_custom_call.1} parent=1 // pred_check
      _
    $region51: #{tpu_custom_call.1} parent=1 // pred_check_branch
      %96 = sbr.rel (0) target = $region53
    $region52: #{tpu_custom_call.1} parent=1 // pred_region
      %97 = dma.done [#allocation3], 1024
    $region53: #{tpu_custom_call.1} parent=1 // pred_fallthru
      _
    // Predicated region
    $region54: #{tpu_custom_call.1} parent=1 // pred_check
      _
    $region55: #{tpu_custom_call.1} parent=1 // pred_check_branch
      %99 = sbr.rel (0) target = $region57
    $region56: #{tpu_custom_call.1} parent=1 // pred_region
      %100 = dma.done [#allocation6], 1024
    $region57: #{tpu_custom_call.1} parent=1 // pred_fallthru
      _
    // Predicated region
    $region58: #{tpu_custom_call.1} parent=1 // pred_check
      _
    $region59: #{tpu_custom_call.1} parent=1 // pred_check_branch
      %102 = sbr.rel (0) target = $region61
    $region60: #{tpu_custom_call.1} parent=1 // pred_region
      %103 = dma.done [#allocation6], 1024
    $region61: #{tpu_custom_call.1} parent=1 // pred_fallthru
      _
    // Predicated region
    $region62: #{tpu_custom_call.1} parent=1 // pred_check
      _
    $region63: #{tpu_custom_call.1} parent=1 // pred_check_branch
      %105 = sbr.rel (0) target = $region65
    $region64: #{tpu_custom_call.1} parent=1 // pred_region
      %106 = dma.done [#allocation9], 2048
    $region65: #{tpu_custom_call.1} parent=1 // pred_fallthru
      _
    // Predicated region
    $region66: #{tpu_custom_call.1} parent=1 // pred_check
      _
    $region67: #{tpu_custom_call.1} parent=1 // pred_check_branch
      %108 = sbr.rel (0) target = $region69
    $region68: #{tpu_custom_call.1} parent=1 // pred_region
      %109 = dma.done [#allocation9], 1024
    $region69: #{tpu_custom_call.1} parent=1 // pred_fallthru
      _
    %v111 = vld [vmem:[%s0] sm:$0xf]
    %v112 = vld [vmem:[%s0 + $0x4] sm:$0xf]
    %v113 = vld [vmem:[%s0 + $0x8] sm:$0xf]
    %v114 = vld [vmem:[%s0 + $0xc] sm:$0xf]
    %v115 = vld [vmem:[%s0 + $0x10] sm:$0xf]
    %v116 = vld [vmem:[%s0 + $0x14] sm:$0xf]
    %v117 = vld [vmem:[%s0 + $0x18] sm:$0xf]
    %v118 = vld [vmem:[%s0 + $0x1c] sm:$0xf]
    %v119 = vld [vmem:[%s0 + $0x20] sm:$0xf]
    %v120 = vld [vmem:[%s0 + $0x24] sm:$0xf]
    %v121 = vld [vmem:[%s0 + $0x28] sm:$0xf]
    %v122 = vld [vmem:[%s0 + $0x2c] sm:$0xf]
    %v123 = vld [vmem:[%s0 + $0x30] sm:$0xf]
    %v124 = vld [vmem:[%s0 + $0x34] sm:$0xf]
    %v125 = vld [vmem:[%s0 + $0x38] sm:$0xf]
    %v126 = vld [vmem:[%s0 + $0x3c] sm:$0xf]
    %v127 = vld [vmem:[#allocation2] sm:$0xf]
    %v128 = vld [vmem:[#allocation2 + $0x4] sm:$0xf]
    %v129 = vld [vmem:[#allocation2 + $0x8] sm:$0xf]
    %v130 = vld [vmem:[#allocation2 + $0xc] sm:$0xf]
    %v131 = vld [vmem:[#allocation2 + $0x10] sm:$0xf]
    %v132 = vld [vmem:[#allocation2 + $0x14] sm:$0xf]
    %v133 = vld [vmem:[#allocation2 + $0x18] sm:$0xf]
    %v134 = vld [vmem:[#allocation2 + $0x1c] sm:$0xf]
    %v135 = vld [vmem:[#allocation2 + $0x20] sm:$0xf]
    %v136 = vld [vmem:[#allocation2 + $0x24] sm:$0xf]
    %v137 = vld [vmem:[#allocation2 + $0x28] sm:$0xf]
    %v138 = vld [vmem:[#allocation2 + $0x2c] sm:$0xf]
    %v139 = vld [vmem:[#allocation2 + $0x30] sm:$0xf]
    %v140 = vld [vmem:[#allocation2 + $0x34] sm:$0xf]
    %v141 = vld [vmem:[#allocation2 + $0x38] sm:$0xf]
    %v142 = vld [vmem:[#allocation2 + $0x3c] sm:$0xf]
    %v143 = vld [vmem:[#allocation5] sm:$0xf]
    %v144 = vld [vmem:[#allocation5 + $0x4] sm:$0xf]
    %v145 = vld [vmem:[#allocation5 + $0x8] sm:$0xf]
    %v146 = vld [vmem:[#allocation5 + $0xc] sm:$0xf]
    %v147 = vld [vmem:[#allocation5 + $0x10] sm:$0xf]
    %v148 = vld [vmem:[#allocation5 + $0x14] sm:$0xf]
    %v149 = vld [vmem:[#allocation5 + $0x18] sm:$0xf]
    %v150 = vld [vmem:[#allocation5 + $0x1c] sm:$0xf]
    %v151 = vld [vmem:[#allocation5 + $0x20] sm:$0xf]
    %v152 = vld [vmem:[#allocation5 + $0x24] sm:$0xf]
    %v153 = vld [vmem:[#allocation5 + $0x28] sm:$0xf]
    %v154 = vld [vmem:[#allocation5 + $0x2c] sm:$0xf]
    %v155 = vld [vmem:[#allocation5 + $0x30] sm:$0xf]
    %v156 = vld [vmem:[#allocation5 + $0x34] sm:$0xf]
    %v157 = vld [vmem:[#allocation5 + $0x38] sm:$0xf]
    %v158 = vld [vmem:[#allocation5 + $0x3c] sm:$0xf]
    %v175 = vunpack.c.l.b16 %v127
    %v176 = vunpack.c.l.b16 %v128
    %v177 = vunpack.c.l.b16 %v129
    %v178 = vunpack.c.l.b16 %v130
    %v179 = vunpack.c.l.b16 %v131
    %v180 = vunpack.c.l.b16 %v132
    %v181 = vunpack.c.l.b16 %v133
    %v182 = vunpack.c.l.b16 %v134
    %v183 = vunpack.c.l.b16 %v135
    %v184 = vunpack.c.l.b16 %v136
    %v185 = vunpack.c.l.b16 %v137
    %v186 = vunpack.c.l.b16 %v138
    %v187 = vunpack.c.l.b16 %v139
    %v188 = vunpack.c.l.b16 %v140
    %v189 = vunpack.c.l.b16 %v141
    %v190 = vunpack.c.l.b16 %v142
    %v191 = vpack.c.b16 %v176, %v175
    %v192 = vpack.c.b16 %v178, %v177
    %v193 = vpack.c.b16 %v180, %v179
    %v194 = vpack.c.b16 %v182, %v181
    %v195 = vpack.c.b16 %v184, %v183
    %v196 = vpack.c.b16 %v186, %v185
    %v197 = vpack.c.b16 %v188, %v187
    %v198 = vpack.c.b16 %v190, %v189
    %v223 = vunpack.c.l.b16 %v143
    %v224 = vunpack.c.l.b16 %v144
    %v225 = vunpack.c.l.b16 %v145
    %v226 = vunpack.c.l.b16 %v146
    %v227 = vunpack.c.l.b16 %v147
    %v228 = vunpack.c.l.b16 %v148
    %v229 = vunpack.c.l.b16 %v149
    %v230 = vunpack.c.l.b16 %v150
    %v231 = vunpack.c.l.b16 %v151
    %v232 = vunpack.c.l.b16 %v152
    %v233 = vunpack.c.l.b16 %v153
    %v234 = vunpack.c.l.b16 %v154
    %v235 = vunpack.c.l.b16 %v155
    %v236 = vunpack.c.l.b16 %v156
    %v237 = vunpack.c.l.b16 %v157
    %v238 = vunpack.c.l.b16 %v158
    %v239 = vpack.c.b16 %v224, %v223
    %v240 = vpack.c.b16 %v226, %v225
    %v241 = vpack.c.b16 %v228, %v227
    %v242 = vpack.c.b16 %v230, %v229
    %v243 = vpack.c.b16 %v232, %v231
    %v244 = vpack.c.b16 %v234, %v233
    %v245 = vpack.c.b16 %v236, %v235
    %v246 = vpack.c.b16 %v238, %v237
    %255 = vmatprep.subr.bf16.mxu0 0
    %256 = vmatpush1.bf16.msra.mxu0 %v239
    %257 = vmatprep.subr.bf16.mxu0 0
    %258 = vmatpush1.bf16.msra.mxu0 %v240
    %259 = vmatprep.subr.bf16.mxu0 0
    %260 = vmatpush1.bf16.msra.mxu0 %v241
    %261 = vmatprep.subr.bf16.mxu0 0
    %262 = vmatpush1.bf16.msra.mxu0 %v242
    %263 = vmatprep.subr.bf16.mxu0 0
    %264 = vmatpush1.bf16.msra.mxu0 %v243
    %265 = vmatprep.subr.bf16.mxu0 0
    %266 = vmatpush1.bf16.msra.mxu0 %v244
    %267 = vmatprep.subr.bf16.mxu0 0
    %268 = vmatpush1.bf16.msra.mxu0 %v245
    %269 = vmatprep.subr.bf16.mxu0 0
    %270 = vmatpush1.bf16.msra.mxu0 %v246
    %271 = vmatprep.subr.bf16.mxu0 0
    %272 = vmatpush1.bf16.msra.mxu0 0
    %273 = vmatprep.subr.bf16.mxu0 0
    %274 = vmatpush1.bf16.msra.mxu0 0
    %275 = vmatprep.subr.bf16.mxu0 0
    %276 = vmatpush1.bf16.msra.mxu0 0
    %277 = vmatprep.subr.bf16.mxu0 0
    %278 = vmatpush1.bf16.msra.mxu0 0
    %279 = vmatprep.subr.bf16.mxu0 0
    %280 = vmatpush1.bf16.msra.mxu0 0
    %281 = vmatprep.subr.bf16.mxu0 0
    %282 = vmatpush1.bf16.msra.mxu0 0
    %283 = vmatprep.subr.bf16.mxu0 0
    %284 = vmatpush1.bf16.msra.mxu0 0
    %285 = vmatprep.subr.bf16.mxu0 0
    %286 = vmatpush1.bf16.msra.mxu0 0
    %287 = vmatprep.mubr.bf16.mxu0 0
    %288 = vmatmul.mubr.bf16.gmra.mrb[0].mxu0 %v191
    %v289 = vpop.f32.mrb[0].mxu0
    %v290 = vadd.f32 0.0, %v289
    %v291 = vpop.f32.mrb[0].mxu0
    %v292 = vpop.f32.mrb[0].mxu0
    %v293 = vadd.f32 0.0, %v292
    %v294 = vpop.f32.mrb[0].mxu0
    %295 = vmatprep.mubr.bf16.mxu0 0
    %296 = vmatmul.mubr.bf16.gmra.mrb[0].mxu0 %v192
    %v297 = vpop.f32.mrb[0].mxu0
    %v298 = vadd.f32 0.0, %v297
    %v299 = vpop.f32.mrb[0].mxu0
    %v300 = vpop.f32.mrb[0].mxu0
    %v301 = vadd.f32 0.0, %v300
    %v302 = vpop.f32.mrb[0].mxu0
    %303 = vmatprep.mubr.bf16.mxu0 0
    %304 = vmatmul.mubr.bf16.gmra.mrb[0].mxu0 %v193
    %v305 = vpop.f32.mrb[0].mxu0
    %v306 = vadd.f32 0.0, %v305
    %v307 = vpop.f32.mrb[0].mxu0
    %v308 = vpop.f32.mrb[0].mxu0
    %v309 = vadd.f32 0.0, %v308
    %v310 = vpop.f32.mrb[0].mxu0
    %311 = vmatprep.mubr.bf16.mxu0 0
    %312 = vmatmul.mubr.bf16.gmra.mrb[0].mxu0 %v194
    %v313 = vpop.f32.mrb[0].mxu0
    %v314 = vadd.f32 0.0, %v313
    %v315 = vpop.f32.mrb[0].mxu0
    %v316 = vpop.f32.mrb[0].mxu0
    %v317 = vadd.f32 0.0, %v316
    %v318 = vpop.f32.mrb[0].mxu0
    %319 = vmatprep.mubr.bf16.mxu0 0
    %320 = vmatmul.mubr.bf16.gmra.mrb[0].mxu0 %v195
    %v321 = vpop.f32.mrb[0].mxu0
    %v322 = vadd.f32 0.0, %v321
    %v323 = vpop.f32.mrb[0].mxu0
    %v324 = vpop.f32.mrb[0].mxu0
    %v325 = vadd.f32 0.0, %v324
    %v326 = vpop.f32.mrb[0].mxu0
    %327 = vmatprep.mubr.bf16.mxu0 0
    %328 = vmatmul.mubr.bf16.gmra.mrb[0].mxu0 %v196
    %v329 = vpop.f32.mrb[0].mxu0
    %v330 = vadd.f32 0.0, %v329
    %v331 = vpop.f32.mrb[0].mxu0
    %v332 = vpop.f32.mrb[0].mxu0
    %v333 = vadd.f32 0.0, %v332
    %v334 = vpop.f32.mrb[0].mxu0
    %335 = vmatprep.mubr.bf16.mxu0 0
    %336 = vmatmul.mubr.bf16.gmra.mrb[0].mxu0 %v197
    %v337 = vpop.f32.mrb[0].mxu0
    %v338 = vadd.f32 0.0, %v337
    %v339 = vpop.f32.mrb[0].mxu0
    %v340 = vpop.f32.mrb[0].mxu0
    %v341 = vadd.f32 0.0, %v340
    %v342 = vpop.f32.mrb[0].mxu0
    %343 = vmatprep.mubr.bf16.mxu0 0
    %344 = vmatmul.mubr.bf16.gmra.mrb[0].mxu0 %v198
    %v345 = vpop.f32.mrb[0].mxu0
    %v346 = vadd.f32 0.0, %v345
    %v347 = vpop.f32.mrb[0].mxu0
    %v348 = vpop.f32.mrb[0].mxu0
    %v349 = vadd.f32 0.0, %v348
    %v350 = vpop.f32.mrb[0].mxu0
    %351 = vdwg.mxu0
    %v352 = vpack.c.bf16 %v293, %v290
    %v353 = vpack.c.bf16 %v301, %v298
    %v354 = vpack.c.bf16 %v309, %v306
    %v355 = vpack.c.bf16 %v317, %v314
    %v356 = vpack.c.bf16 %v325, %v322
    %v357 = vpack.c.bf16 %v333, %v330
    %v358 = vpack.c.bf16 %v341, %v338
    %v359 = vpack.c.bf16 %v349, %v346
    %v360 = vld [vmem:[%s3] sm:$0x1]
    %v362 = vlaneseq
    %v363 = vshrl.u32 %v362, 7
    %v364 = vsub.s32 0, %v363
    %v365 = vrot.slane %v360, %v364
    %v383 = vunpack.c.l.b16 %v111
    %v384 = vunpack.c.l.b16 %v112
    %v385 = vunpack.c.l.b16 %v113
    %v386 = vunpack.c.l.b16 %v114
    %v387 = vunpack.c.l.b16 %v115
    %v388 = vunpack.c.l.b16 %v116
    %v389 = vunpack.c.l.b16 %v117
    %v390 = vunpack.c.l.b16 %v118
    %v391 = vunpack.c.l.b16 %v119
    %v392 = vunpack.c.l.b16 %v120
    %v393 = vunpack.c.l.b16 %v121
    %v394 = vunpack.c.l.b16 %v122
    %v395 = vunpack.c.l.b16 %v123
    %v396 = vunpack.c.l.b16 %v124
    %v397 = vunpack.c.l.b16 %v125
    %v398 = vunpack.c.l.b16 %v126
    %v399 = vpack.c.b16 %v384, %v383
    %v400 = vpack.c.b16 %v386, %v385
    %v401 = vpack.c.b16 %v388, %v387
    %v402 = vpack.c.b16 %v390, %v389
    %v403 = vpack.c.b16 %v392, %v391
    %v404 = vpack.c.b16 %v394, %v393
    %v405 = vpack.c.b16 %v396, %v395
    %v406 = vpack.c.b16 %v398, %v397
    %415 = vmatprep.subr.bf16.mxu0 0
    %416 = vmatpush1.bf16.msra.mxu0 %v352
    %417 = vmatprep.subr.bf16.mxu0 0
    %418 = vmatpush1.bf16.msra.mxu0 %v353
    %419 = vmatprep.subr.bf16.mxu0 0
    %420 = vmatpush1.bf16.msra.mxu0 %v354
    %421 = vmatprep.subr.bf16.mxu0 0
    %422 = vmatpush1.bf16.msra.mxu0 %v355
    %423 = vmatprep.subr.bf16.mxu0 0
    %424 = vmatpush1.bf16.msra.mxu0 %v356
    %425 = vmatprep.subr.bf16.mxu0 0
    %426 = vmatpush1.bf16.msra.mxu0 %v357
    %427 = vmatprep.subr.bf16.mxu0 0
    %428 = vmatpush1.bf16.msra.mxu0 %v358
    %429 = vmatprep.subr.bf16.mxu0 0
    %430 = vmatpush1.bf16.msra.mxu0 %v359
    %431 = vmatprep.subr.bf16.mxu0 0
    %432 = vmatpush1.bf16.msra.mxu0 0
    %433 = vmatprep.subr.bf16.mxu0 0
    %434 = vmatpush1.bf16.msra.mxu0 0
    %435 = vmatprep.subr.bf16.mxu0 0
    %436 = vmatpush1.bf16.msra.mxu0 0
    %437 = vmatprep.subr.bf16.mxu0 0
    %438 = vmatpush1.bf16.msra.mxu0 0
    %439 = vmatprep.subr.bf16.mxu0 0
    %440 = vmatpush1.bf16.msra.mxu0 0
    %441 = vmatprep.subr.bf16.mxu0 0
    %442 = vmatpush1.bf16.msra.mxu0 0
    %443 = vmatprep.subr.bf16.mxu0 0
    %444 = vmatpush1.bf16.msra.mxu0 0
    %445 = vmatprep.subr.bf16.mxu0 0
    %446 = vmatpush1.bf16.msra.mxu0 0
    %447 = vmatprep.mubr.bf16.mxu0 0
    %448 = vmatmul.mubr.bf16.gmra.mrb[0].mxu0 %v399
    %v449 = vpop.f32.mrb[0].mxu0
    %v450 = vadd.f32 %v365, %v449
    %v451 = vpop.f32.mrb[0].mxu0
    %v452 = vpop.f32.mrb[0].mxu0
    %v453 = vadd.f32 %v365, %v452
    %v454 = vpop.f32.mrb[0].mxu0
    %455 = vmatprep.mubr.bf16.mxu0 0
    %456 = vmatmul.mubr.bf16.gmra.mrb[0].mxu0 %v400
    %v457 = vpop.f32.mrb[0].mxu0
    %v458 = vadd.f32 %v365, %v457
    %v459 = vpop.f32.mrb[0].mxu0
    %v460 = vpop.f32.mrb[0].mxu0
    %v461 = vadd.f32 %v365, %v460
    %v462 = vpop.f32.mrb[0].mxu0
    %463 = vmatprep.mubr.bf16.mxu0 0
    %464 = vmatmul.mubr.bf16.gmra.mrb[0].mxu0 %v401
    %v465 = vpop.f32.mrb[0].mxu0
    %v466 = vadd.f32 %v365, %v465
    %v467 = vpop.f32.mrb[0].mxu0
    %v468 = vpop.f32.mrb[0].mxu0
    %v469 = vadd.f32 %v365, %v468
    %v470 = vpop.f32.mrb[0].mxu0
    %471 = vmatprep.mubr.bf16.mxu0 0
    %472 = vmatmul.mubr.bf16.gmra.mrb[0].mxu0 %v402
    %v473 = vpop.f32.mrb[0].mxu0
    %v474 = vadd.f32 %v365, %v473
    %v475 = vpop.f32.mrb[0].mxu0
    %v476 = vpop.f32.mrb[0].mxu0
    %v477 = vadd.f32 %v365, %v476
    %v478 = vpop.f32.mrb[0].mxu0
    %479 = vmatprep.mubr.bf16.mxu0 0
    %480 = vmatmul.mubr.bf16.gmra.mrb[0].mxu0 %v403
    %v481 = vpop.f32.mrb[0].mxu0
    %v482 = vadd.f32 %v365, %v481
    %v483 = vpop.f32.mrb[0].mxu0
    %v484 = vpop.f32.mrb[0].mxu0
    %v485 = vadd.f32 %v365, %v484
    %v486 = vpop.f32.mrb[0].mxu0
    %487 = vmatprep.mubr.bf16.mxu0 0
    %488 = vmatmul.mubr.bf16.gmra.mrb[0].mxu0 %v404
    %v489 = vpop.f32.mrb[0].mxu0
    %v490 = vadd.f32 %v365, %v489
    %v491 = vpop.f32.mrb[0].mxu0
    %v492 = vpop.f32.mrb[0].mxu0
    %v493 = vadd.f32 %v365, %v492
    %v494 = vpop.f32.mrb[0].mxu0
    %495 = vmatprep.mubr.bf16.mxu0 0
    %496 = vmatmul.mubr.bf16.gmra.mrb[0].mxu0 %v405
    %v497 = vpop.f32.mrb[0].mxu0
    %v498 = vadd.f32 %v365, %v497
    %v499 = vpop.f32.mrb[0].mxu0
    %v500 = vpop.f32.mrb[0].mxu0
    %v501 = vadd.f32 %v365, %v500
    %v502 = vpop.f32.mrb[0].mxu0
    %503 = vmatprep.mubr.bf16.mxu0 0
    %504 = vmatmul.mubr.bf16.gmra.mrb[0].mxu0 %v406
    %v505 = vpop.f32.mrb[0].mxu0
    %v506 = vadd.f32 %v365, %v505
    %v507 = vpop.f32.mrb[0].mxu0
    %v508 = vpop.f32.mrb[0].mxu0
    %v509 = vadd.f32 %v365, %v508
    %v510 = vpop.f32.mrb[0].mxu0
    %511 = vdwg.mxu0
    %v512 = vmax.f32 %v450, 0.0
    %v513 = vmax.f32 %v453, 0.0
    %v514 = vmax.f32 %v458, 0.0
    %v515 = vmax.f32 %v461, 0.0
    %v516 = vmax.f32 %v466, 0.0
    %v517 = vmax.f32 %v469, 0.0
    %v518 = vmax.f32 %v474, 0.0
    %v519 = vmax.f32 %v477, 0.0
    %v520 = vmax.f32 %v482, 0.0
    %v521 = vmax.f32 %v485, 0.0
    %v522 = vmax.f32 %v490, 0.0
    %v523 = vmax.f32 %v493, 0.0
    %v524 = vmax.f32 %v498, 0.0
    %v525 = vmax.f32 %v501, 0.0
    %v526 = vmax.f32 %v506, 0.0
    %v527 = vmax.f32 %v509, 0.0
    %v528 = vpack.c.bf16 %v513, %v512
    %v529 = vpack.c.bf16 %v515, %v514
    %v530 = vpack.c.bf16 %v517, %v516
    %v531 = vpack.c.bf16 %v519, %v518
    %v532 = vpack.c.bf16 %v521, %v520
    %v533 = vpack.c.bf16 %v523, %v522
    %v534 = vpack.c.bf16 %v525, %v524
    %v535 = vpack.c.bf16 %v527, %v526
    %v536 = vld [vmem:[#allocation7] sm:$0xf]
    %v537 = vld [vmem:[#allocation7 + $0x4] sm:$0xf]
    %v538 = vld [vmem:[#allocation7 + $0x8] sm:$0xf]
    %v539 = vld [vmem:[#allocation7 + $0xc] sm:$0xf]
    %v540 = vld [vmem:[#allocation7 + $0x10] sm:$0xf]
    %v541 = vld [vmem:[#allocation7 + $0x14] sm:$0xf]
    %v542 = vld [vmem:[#allocation7 + $0x18] sm:$0xf]
    %v543 = vld [vmem:[#allocation7 + $0x1c] sm:$0xf]
    %v544 = vld [vmem:[#allocation7 + $0x20] sm:$0xf]
    %v545 = vld [vmem:[#allocation7 + $0x24] sm:$0xf]
    %v546 = vld [vmem:[#allocation7 + $0x28] sm:$0xf]
    %v547 = vld [vmem:[#allocation7 + $0x2c] sm:$0xf]
    %v548 = vld [vmem:[#allocation7 + $0x30] sm:$0xf]
    %v549 = vld [vmem:[#allocation7 + $0x34] sm:$0xf]
    %v550 = vld [vmem:[#allocation7 + $0x38] sm:$0xf]
    %v551 = vld [vmem:[#allocation7 + $0x3c] sm:$0xf]
    %v568 = vunpack.c.l.b16 %v536
    %v569 = vunpack.c.l.b16 %v537
    %v570 = vunpack.c.l.b16 %v538
    %v571 = vunpack.c.l.b16 %v539
    %v572 = vunpack.c.l.b16 %v540
    %v573 = vunpack.c.l.b16 %v541
    %v574 = vunpack.c.l.b16 %v542
    %v575 = vunpack.c.l.b16 %v543
    %v576 = vunpack.c.l.b16 %v544
    %v577 = vunpack.c.l.b16 %v545
    %v578 = vunpack.c.l.b16 %v546
    %v579 = vunpack.c.l.b16 %v547
    %v580 = vunpack.c.l.b16 %v548
    %v581 = vunpack.c.l.b16 %v549
    %v582 = vunpack.c.l.b16 %v550
    %v583 = vunpack.c.l.b16 %v551
    %v584 = vpack.c.b16 %v569, %v568
    %v585 = vpack.c.b16 %v571, %v570
    %v586 = vpack.c.b16 %v573, %v572
    %v587 = vpack.c.b16 %v575, %v574
    %v588 = vpack.c.b16 %v577, %v576
    %v589 = vpack.c.b16 %v579, %v578
    %v590 = vpack.c.b16 %v581, %v580
    %v591 = vpack.c.b16 %v583, %v582
    %600 = vmatprep.subr.bf16.mxu0 0
    %601 = vmatpush1.bf16.msra.mxu0 %v584
    %602 = vmatprep.subr.bf16.mxu0 0
    %603 = vmatpush1.bf16.msra.mxu0 %v585
    %604 = vmatprep.subr.bf16.mxu0 0
    %605 = vmatpush1.bf16.msra.mxu0 %v586
    %606 = vmatprep.subr.bf16.mxu0 0
    %607 = vmatpush1.bf16.msra.mxu0 %v587
    %608 = vmatprep.subr.bf16.mxu0 0
    %609 = vmatpush1.bf16.msra.mxu0 %v588
    %610 = vmatprep.subr.bf16.mxu0 0
    %611 = vmatpush1.bf16.msra.mxu0 %v589
    %612 = vmatprep.subr.bf16.mxu0 0
    %613 = vmatpush1.bf16.msra.mxu0 %v590
    %614 = vmatprep.subr.bf16.mxu0 0
    %615 = vmatpush1.bf16.msra.mxu0 %v591
    %616 = vmatprep.subr.bf16.mxu0 0
    %617 = vmatpush1.bf16.msra.mxu0 0
    %618 = vmatprep.subr.bf16.mxu0 0
    %619 = vmatpush1.bf16.msra.mxu0 0
    %620 = vmatprep.subr.bf16.mxu0 0
    %621 = vmatpush1.bf16.msra.mxu0 0
    %622 = vmatprep.subr.bf16.mxu0 0
    %623 = vmatpush1.bf16.msra.mxu0 0
    %624 = vmatprep.subr.bf16.mxu0 0
    %625 = vmatpush1.bf16.msra.mxu0 0
    %626 = vmatprep.subr.bf16.mxu0 0
    %627 = vmatpush1.bf16.msra.mxu0 0
    %628 = vmatprep.subr.bf16.mxu0 0
    %629 = vmatpush1.bf16.msra.mxu0 0
    %630 = vmatprep.subr.bf16.mxu0 0
    %631 = vmatpush1.bf16.msra.mxu0 0
    %632 = vmatprep.mubr.bf16.mxu0 0
    %633 = vmatmul.mubr.bf16.gmra.mrb[0].mxu0 %v528
    %v634 = vpop.f32.mrb[0].mxu0
    %v635 = vadd.f32 0.0, %v634
    %v636 = vpop.f32.mrb[0].mxu0
    %v637 = vpop.f32.mrb[0].mxu0
    %v638 = vadd.f32 0.0, %v637
    %v639 = vpop.f32.mrb[0].mxu0
    %640 = vmatprep.mubr.bf16.mxu0 0
    %641 = vmatmul.mubr.bf16.gmra.mrb[0].mxu0 %v529
    %v642 = vpop.f32.mrb[0].mxu0
    %v643 = vadd.f32 0.0, %v642
    %v644 = vpop.f32.mrb[0].mxu0
    %v645 = vpop.f32.mrb[0].mxu0
    %v646 = vadd.f32 0.0, %v645
    %v647 = vpop.f32.mrb[0].mxu0
    %648 = vmatprep.mubr.bf16.mxu0 0
    %649 = vmatmul.mubr.bf16.gmra.mrb[0].mxu0 %v530
    %v650 = vpop.f32.mrb[0].mxu0
    %v651 = vadd.f32 0.0, %v650
    %v652 = vpop.f32.mrb[0].mxu0
    %v653 = vpop.f32.mrb[0].mxu0
    %v654 = vadd.f32 0.0, %v653
    %v655 = vpop.f32.mrb[0].mxu0
    %656 = vmatprep.mubr.bf16.mxu0 0
    %657 = vmatmul.mubr.bf16.gmra.mrb[0].mxu0 %v531
    %v658 = vpop.f32.mrb[0].mxu0
    %v659 = vadd.f32 0.0, %v658
    %v660 = vpop.f32.mrb[0].mxu0
    %v661 = vpop.f32.mrb[0].mxu0
    %v662 = vadd.f32 0.0, %v661
    %v663 = vpop.f32.mrb[0].mxu0
    %664 = vmatprep.mubr.bf16.mxu0 0
    %665 = vmatmul.mubr.bf16.gmra.mrb[0].mxu0 %v532
    %v666 = vpop.f32.mrb[0].mxu0
    %v667 = vadd.f32 0.0, %v666
    %v668 = vpop.f32.mrb[0].mxu0
    %v669 = vpop.f32.mrb[0].mxu0
    %v670 = vadd.f32 0.0, %v669
    %v671 = vpop.f32.mrb[0].mxu0
    %672 = vmatprep.mubr.bf16.mxu0 0
    %673 = vmatmul.mubr.bf16.gmra.mrb[0].mxu0 %v533
    %v674 = vpop.f32.mrb[0].mxu0
    %v675 = vadd.f32 0.0, %v674
    %v676 = vpop.f32.mrb[0].mxu0
    %v677 = vpop.f32.mrb[0].mxu0
    %v678 = vadd.f32 0.0, %v677
    %v679 = vpop.f32.mrb[0].mxu0
    %680 = vmatprep.mubr.bf16.mxu0 0
    %681 = vmatmul.mubr.bf16.gmra.mrb[0].mxu0 %v534
    %v682 = vpop.f32.mrb[0].mxu0
    %v683 = vadd.f32 0.0, %v682
    %v684 = vpop.f32.mrb[0].mxu0
    %v685 = vpop.f32.mrb[0].mxu0
    %v686 = vadd.f32 0.0, %v685
    %v687 = vpop.f32.mrb[0].mxu0
    %688 = vmatprep.mubr.bf16.mxu0 0
    %689 = vmatmul.mubr.bf16.gmra.mrb[0].mxu0 %v535
    %v690 = vpop.f32.mrb[0].mxu0
    %v691 = vadd.f32 0.0, %v690
    %v692 = vpop.f32.mrb[0].mxu0
    %v693 = vpop.f32.mrb[0].mxu0
    %v694 = vadd.f32 0.0, %v693
    %v695 = vpop.f32.mrb[0].mxu0
    %696 = vdwg.mxu0
    %v697 = vpack.c.bf16 %v638, %v635
    %v698 = vpack.c.bf16 %v646, %v643
    %v699 = vpack.c.bf16 %v654, %v651
    %v700 = vpack.c.bf16 %v662, %v659
    %v701 = vpack.c.bf16 %v670, %v667
    %v702 = vpack.c.bf16 %v678, %v675
    %v703 = vpack.c.bf16 %v686, %v683
    %v704 = vpack.c.bf16 %v694, %v691
    %v705 = vld [vmem:[%s5] sm:$0x1]
    %v707 = vlaneseq
    %v708 = vshrl.u32 %v707, 7
    %v709 = vsub.s32 0, %v708
    %v710 = vrot.slane %v705, %v709
    %712 = vmatprep.subr.bf16.mxu0 0
    %713 = vmatpush1.bf16.msra.mxu0 %v697
    %714 = vmatprep.subr.bf16.mxu0 0
    %715 = vmatpush1.bf16.msra.mxu0 %v698
    %716 = vmatprep.subr.bf16.mxu0 0
    %717 = vmatpush1.bf16.msra.mxu0 %v699
    %718 = vmatprep.subr.bf16.mxu0 0
    %719 = vmatpush1.bf16.msra.mxu0 %v700
    %720 = vmatprep.subr.bf16.mxu0 0
    %721 = vmatpush1.bf16.msra.mxu0 %v701
    %722 = vmatprep.subr.bf16.mxu0 0
    %723 = vmatpush1.bf16.msra.mxu0 %v702
    %724 = vmatprep.subr.bf16.mxu0 0
    %725 = vmatpush1.bf16.msra.mxu0 %v703
    %726 = vmatprep.subr.bf16.mxu0 0
    %727 = vmatpush1.bf16.msra.mxu0 %v704
    %728 = vmatprep.subr.bf16.mxu0 0
    %729 = vmatpush1.bf16.msra.mxu0 0
    %730 = vmatprep.subr.bf16.mxu0 0
    %731 = vmatpush1.bf16.msra.mxu0 0
    %732 = vmatprep.subr.bf16.mxu0 0
    %733 = vmatpush1.bf16.msra.mxu0 0
    %734 = vmatprep.subr.bf16.mxu0 0
    %735 = vmatpush1.bf16.msra.mxu0 0
    %736 = vmatprep.subr.bf16.mxu0 0
    %737 = vmatpush1.bf16.msra.mxu0 0
    %738 = vmatprep.subr.bf16.mxu0 0
    %739 = vmatpush1.bf16.msra.mxu0 0
    %740 = vmatprep.subr.bf16.mxu0 0
    %741 = vmatpush1.bf16.msra.mxu0 0
    %742 = vmatprep.subr.bf16.mxu0 0
    %743 = vmatpush1.bf16.msra.mxu0 0
    %744 = vmatprep.mubr.bf16.mxu0 0
    %745 = vmatmul.mubr.bf16.gmra.mrb[0].mxu0 %v399
    %v746 = vpop.f32.mrb[0].mxu0
    %v747 = vadd.f32 %v710, %v746
    %v748 = vpop.f32.mrb[0].mxu0
    %v749 = vpop.f32.mrb[0].mxu0
    %v750 = vadd.f32 %v710, %v749
    %v751 = vpop.f32.mrb[0].mxu0
    %752 = vmatprep.mubr.bf16.mxu0 0
    %753 = vmatmul.mubr.bf16.gmra.mrb[0].mxu0 %v400
    %v754 = vpop.f32.mrb[0].mxu0
    %v755 = vadd.f32 %v710, %v754
    %v756 = vpop.f32.mrb[0].mxu0
    %v757 = vpop.f32.mrb[0].mxu0
    %v758 = vadd.f32 %v710, %v757
    %v759 = vpop.f32.mrb[0].mxu0
    %760 = vmatprep.mubr.bf16.mxu0 0
    %761 = vmatmul.mubr.bf16.gmra.mrb[0].mxu0 %v401
    %v762 = vpop.f32.mrb[0].mxu0
    %v763 = vadd.f32 %v710, %v762
    %v764 = vpop.f32.mrb[0].mxu0
    %v765 = vpop.f32.mrb[0].mxu0
    %v766 = vadd.f32 %v710, %v765
    %v767 = vpop.f32.mrb[0].mxu0
    %768 = vmatprep.mubr.bf16.mxu0 0
    %769 = vmatmul.mubr.bf16.gmra.mrb[0].mxu0 %v402
    %v770 = vpop.f32.mrb[0].mxu0
    %v771 = vadd.f32 %v710, %v770
    %v772 = vpop.f32.mrb[0].mxu0
    %v773 = vpop.f32.mrb[0].mxu0
    %v774 = vadd.f32 %v710, %v773
    %v775 = vpop.f32.mrb[0].mxu0
    %776 = vmatprep.mubr.bf16.mxu0 0
    %777 = vmatmul.mubr.bf16.gmra.mrb[0].mxu0 %v403
    %v778 = vpop.f32.mrb[0].mxu0
    %v779 = vadd.f32 %v710, %v778
    %v780 = vpop.f32.mrb[0].mxu0
    %v781 = vpop.f32.mrb[0].mxu0
    %v782 = vadd.f32 %v710, %v781
    %v783 = vpop.f32.mrb[0].mxu0
    %784 = vmatprep.mubr.bf16.mxu0 0
    %785 = vmatmul.mubr.bf16.gmra.mrb[0].mxu0 %v404
    %v786 = vpop.f32.mrb[0].mxu0
    %v787 = vadd.f32 %v710, %v786
    %v788 = vpop.f32.mrb[0].mxu0
    %v789 = vpop.f32.mrb[0].mxu0
    %v790 = vadd.f32 %v710, %v789
    %v791 = vpop.f32.mrb[0].mxu0
    %792 = vmatprep.mubr.bf16.mxu0 0
    %793 = vmatmul.mubr.bf16.gmra.mrb[0].mxu0 %v405
    %v794 = vpop.f32.mrb[0].mxu0
    %v795 = vadd.f32 %v710, %v794
    %v796 = vpop.f32.mrb[0].mxu0
    %v797 = vpop.f32.mrb[0].mxu0
    %v798 = vadd.f32 %v710, %v797
    %v799 = vpop.f32.mrb[0].mxu0
    %800 = vmatprep.mubr.bf16.mxu0 0
    %801 = vmatmul.mubr.bf16.gmra.mrb[0].mxu0 %v406
    %v802 = vpop.f32.mrb[0].mxu0
    %v803 = vadd.f32 %v710, %v802
    %v804 = vpop.f32.mrb[0].mxu0
    %v805 = vpop.f32.mrb[0].mxu0
    %v806 = vadd.f32 %v710, %v805
    %v807 = vpop.f32.mrb[0].mxu0
    %808 = vdwg.mxu0
    %v809 = vmax.f32 %v747, 0.0
    %v810 = vmax.f32 %v750, 0.0
    %v811 = vmax.f32 %v755, 0.0
    %v812 = vmax.f32 %v758, 0.0
    %v813 = vmax.f32 %v763, 0.0
    %v814 = vmax.f32 %v766, 0.0
    %v815 = vmax.f32 %v771, 0.0
    %v816 = vmax.f32 %v774, 0.0
    %v817 = vmax.f32 %v779, 0.0
    %v818 = vmax.f32 %v782, 0.0
    %v819 = vmax.f32 %v787, 0.0
    %v820 = vmax.f32 %v790, 0.0
    %v821 = vmax.f32 %v795, 0.0
    %v822 = vmax.f32 %v798, 0.0
    %v823 = vmax.f32 %v803, 0.0
    %v824 = vmax.f32 %v806, 0.0
    %v825 = vpack.c.bf16 %v810, %v809
    %v826 = vpack.c.bf16 %v812, %v811
    %v827 = vpack.c.bf16 %v814, %v813
    %v828 = vpack.c.bf16 %v816, %v815
    %v829 = vpack.c.bf16 %v818, %v817
    %v830 = vpack.c.bf16 %v820, %v819
    %v831 = vpack.c.bf16 %v822, %v821
    %v832 = vpack.c.bf16 %v824, %v823
    %v833 = vld [vmem:[#allocation8] sm:$0xff]
    %v834 = vld [vmem:[#allocation8 + $0x8] sm:$0xff]
    %v835 = vld [vmem:[#allocation8 + $0x10] sm:$0xff]
    %v836 = vld [vmem:[#allocation8 + $0x18] sm:$0xff]
    %v837 = vld [vmem:[#allocation8 + $0x20] sm:$0xff]
    %v838 = vld [vmem:[#allocation8 + $0x28] sm:$0xff]
    %v839 = vld [vmem:[#allocation8 + $0x30] sm:$0xff]
    %v840 = vld [vmem:[#allocation8 + $0x38] sm:$0xff]
    %v841 = vld [vmem:[#allocation8 + $0x40] sm:$0xff]
    %v842 = vld [vmem:[#allocation8 + $0x48] sm:$0xff]
    %v843 = vld [vmem:[#allocation8 + $0x50] sm:$0xff]
    %v844 = vld [vmem:[#allocation8 + $0x58] sm:$0xff]
    %v845 = vld [vmem:[#allocation8 + $0x60] sm:$0xff]
    %v846 = vld [vmem:[#allocation8 + $0x68] sm:$0xff]
    %v847 = vld [vmem:[#allocation8 + $0x70] sm:$0xff]
    %v848 = vld [vmem:[#allocation8 + $0x78] sm:$0xff]
    %v849 = vld [vmem:[%s7] sm:$0x3]
    %v851 = vlaneseq
    %v852 = vshrl.u32 %v851, 7
    %v853 = vsub.s32 0, %v852
    %v854 = vrot.slane %v849, %v853
    %v855 = vlaneseq
    %v856 = vshrl.u32 %v855, 7
    %v857 = vsub.s32 1, %v856
    %v858 = vrot.slane %v849, %v857
    %v877 = vunpack.c.l.b16 %v833
    %v878 = vunpack.c.h.b16 %v833
    %v879 = vunpack.c.l.b16 %v834
    %v880 = vunpack.c.h.b16 %v834
    %v881 = vunpack.c.l.b16 %v835
    %v882 = vunpack.c.h.b16 %v835
    %v883 = vunpack.c.l.b16 %v836
    %v884 = vunpack.c.h.b16 %v836
    %v885 = vunpack.c.l.b16 %v837
    %v886 = vunpack.c.h.b16 %v837
    %v887 = vunpack.c.l.b16 %v838
    %v888 = vunpack.c.h.b16 %v838
    %v889 = vunpack.c.l.b16 %v839
    %v890 = vunpack.c.h.b16 %v839
    %v891 = vunpack.c.l.b16 %v840
    %v892 = vunpack.c.h.b16 %v840
    %v893 = vunpack.c.l.b16 %v841
    %v894 = vunpack.c.h.b16 %v841
    %v895 = vunpack.c.l.b16 %v842
    %v896 = vunpack.c.h.b16 %v842
    %v897 = vunpack.c.l.b16 %v843
    %v898 = vunpack.c.h.b16 %v843
    %v899 = vunpack.c.l.b16 %v844
    %v900 = vunpack.c.h.b16 %v844
    %v901 = vunpack.c.l.b16 %v845
    %v902 = vunpack.c.h.b16 %v845
    %v903 = vunpack.c.l.b16 %v846
    %v904 = vunpack.c.h.b16 %v846
    %v905 = vunpack.c.l.b16 %v847
    %v906 = vunpack.c.h.b16 %v847
    %v907 = vunpack.c.l.b16 %v848
    %v908 = vunpack.c.h.b16 %v848
    %v909 = vpack.c.b16 %v879, %v877
    %v910 = vpack.c.b16 %v880, %v878
    %v911 = vpack.c.b16 %v883, %v881
    %v912 = vpack.c.b16 %v884, %v882
    %v913 = vpack.c.b16 %v887, %v885
    %v914 = vpack.c.b16 %v888, %v886
    %v915 = vpack.c.b16 %v891, %v889
    %v916 = vpack.c.b16 %v892, %v890
    %v917 = vpack.c.b16 %v895, %v893
    %v918 = vpack.c.b16 %v896, %v894
    %v919 = vpack.c.b16 %v899, %v897
    %v920 = vpack.c.b16 %v900, %v898
    %v921 = vpack.c.b16 %v903, %v901
    %v922 = vpack.c.b16 %v904, %v902
    %v923 = vpack.c.b16 %v907, %v905
    %v924 = vpack.c.b16 %v908, %v906
    %941 = vmatprep.subr.bf16.mxu0 %v910
    %942 = vmatpush1.bf16.msra.mxu0 %v909
    %943 = vmatprep.subr.bf16.mxu0 %v912
    %944 = vmatpush1.bf16.msra.mxu0 %v911
    %945 = vmatprep.subr.bf16.mxu0 %v914
    %946 = vmatpush1.bf16.msra.mxu0 %v913
    %947 = vmatprep.subr.bf16.mxu0 %v916
    %948 = vmatpush1.bf16.msra.mxu0 %v915
    %949 = vmatprep.subr.bf16.mxu0 %v918
    %950 = vmatpush1.bf16.msra.mxu0 %v917
    %951 = vmatprep.subr.bf16.mxu0 %v920
    %952 = vmatpush1.bf16.msra.mxu0 %v919
    %953 = vmatprep.subr.bf16.mxu0 %v922
    %954 = vmatpush1.bf16.msra.mxu0 %v921
    %955 = vmatprep.subr.bf16.mxu0 %v924
    %956 = vmatpush1.bf16.msra.mxu0 %v923
    %957 = vmatprep.subr.bf16.mxu0 0
    %958 = vmatpush1.bf16.msra.mxu0 0
    %959 = vmatprep.subr.bf16.mxu0 0
    %960 = vmatpush1.bf16.msra.mxu0 0
    %961 = vmatprep.subr.bf16.mxu0 0
    %962 = vmatpush1.bf16.msra.mxu0 0
    %963 = vmatprep.subr.bf16.mxu0 0
    %964 = vmatpush1.bf16.msra.mxu0 0
    %965 = vmatprep.subr.bf16.mxu0 0
    %966 = vmatpush1.bf16.msra.mxu0 0
    %967 = vmatprep.subr.bf16.mxu0 0
    %968 = vmatpush1.bf16.msra.mxu0 0
    %969 = vmatprep.subr.bf16.mxu0 0
    %970 = vmatpush1.bf16.msra.mxu0 0
    %971 = vmatprep.subr.bf16.mxu0 0
    %972 = vmatpush1.bf16.msra.mxu0 0
    %973 = vmatprep.mubr.bf16.mxu0 0
    %974 = vmatmul.mubr.bf16.gmra.mrb[0].mxu0 %v825
    %v975 = vpop.f32.mrb[0].mxu0
    %v976 = vadd.f32 %v854, %v975
    %v977 = vpop.f32.mrb[0].mxu0
    %v978 = vadd.f32 %v858, %v977
    %v979 = vpop.f32.mrb[0].mxu0
    %v980 = vadd.f32 %v854, %v979
    %v981 = vpop.f32.mrb[0].mxu0
    %v982 = vadd.f32 %v858, %v981
    %983 = vmatprep.mubr.bf16.mxu0 0
    %984 = vmatmul.mubr.bf16.gmra.mrb[0].mxu0 %v826
    %v985 = vpop.f32.mrb[0].mxu0
    %v986 = vadd.f32 %v854, %v985
    %v987 = vpop.f32.mrb[0].mxu0
    %v988 = vadd.f32 %v858, %v987
    %v989 = vpop.f32.mrb[0].mxu0
    %v990 = vadd.f32 %v854, %v989
    %v991 = vpop.f32.mrb[0].mxu0
    %v992 = vadd.f32 %v858, %v991
    %993 = vmatprep.mubr.bf16.mxu0 0
    %994 = vmatmul.mubr.bf16.gmra.mrb[0].mxu0 %v827
    %v995 = vpop.f32.mrb[0].mxu0
    %v996 = vadd.f32 %v854, %v995
    %v997 = vpop.f32.mrb[0].mxu0
    %v998 = vadd.f32 %v858, %v997
    %v999 = vpop.f32.mrb[0].mxu0
    %v1000 = vadd.f32 %v854, %v999
    %v1001 = vpop.f32.mrb[0].mxu0
    %v1002 = vadd.f32 %v858, %v1001
    %1003 = vmatprep.mubr.bf16.mxu0 0
    %1004 = vmatmul.mubr.bf16.gmra.mrb[0].mxu0 %v828
    %v1005 = vpop.f32.mrb[0].mxu0
    %v1006 = vadd.f32 %v854, %v1005
    %v1007 = vpop.f32.mrb[0].mxu0
    %v1008 = vadd.f32 %v858, %v1007
    %v1009 = vpop.f32.mrb[0].mxu0
    %v1010 = vadd.f32 %v854, %v1009
    %v1011 = vpop.f32.mrb[0].mxu0
    %v1012 = vadd.f32 %v858, %v1011
    %1013 = vmatprep.mubr.bf16.mxu0 0
    %1014 = vmatmul.mubr.bf16.gmra.mrb[0].mxu0 %v829
    %v1015 = vpop.f32.mrb[0].mxu0
    %v1016 = vadd.f32 %v854, %v1015
    %v1017 = vpop.f32.mrb[0].mxu0
    %v1018 = vadd.f32 %v858, %v1017
    %v1019 = vpop.f32.mrb[0].mxu0
    %v1020 = vadd.f32 %v854, %v1019
    %v1021 = vpop.f32.mrb[0].mxu0
    %v1022 = vadd.f32 %v858, %v1021
    %1023 = vmatprep.mubr.bf16.mxu0 0
    %1024 = vmatmul.mubr.bf16.gmra.mrb[0].mxu0 %v830
    %v1025 = vpop.f32.mrb[0].mxu0
    %v1026 = vadd.f32 %v854, %v1025
    %v1027 = vpop.f32.mrb[0].mxu0
    %v1028 = vadd.f32 %v858, %v1027
    %v1029 = vpop.f32.mrb[0].mxu0
    %v1030 = vadd.f32 %v854, %v1029
    %v1031 = vpop.f32.mrb[0].mxu0
    %v1032 = vadd.f32 %v858, %v1031
    %1033 = vmatprep.mubr.bf16.mxu0 0
    %1034 = vmatmul.mubr.bf16.gmra.mrb[0].mxu0 %v831
    %v1035 = vpop.f32.mrb[0].mxu0
    %v1036 = vadd.f32 %v854, %v1035
    %v1037 = vpop.f32.mrb[0].mxu0
    %v1038 = vadd.f32 %v858, %v1037
    %v1039 = vpop.f32.mrb[0].mxu0
    %v1040 = vadd.f32 %v854, %v1039
    %v1041 = vpop.f32.mrb[0].mxu0
    %v1042 = vadd.f32 %v858, %v1041
    %1043 = vmatprep.mubr.bf16.mxu0 0
    %1044 = vmatmul.mubr.bf16.gmra.mrb[0].mxu0 %v832
    %v1045 = vpop.f32.mrb[0].mxu0
    %v1046 = vadd.f32 %v854, %v1045
    %v1047 = vpop.f32.mrb[0].mxu0
    %v1048 = vadd.f32 %v858, %v1047
    %v1049 = vpop.f32.mrb[0].mxu0
    %v1050 = vadd.f32 %v854, %v1049
    %v1051 = vpop.f32.mrb[0].mxu0
    %v1052 = vadd.f32 %v858, %v1051
    %1053 = vdwg.mxu0
    %v1054 = vpack.c.bf16 %v980, %v976
    %v1055 = vpack.c.bf16 %v982, %v978
    %v1056 = vpack.c.bf16 %v990, %v986
    %v1057 = vpack.c.bf16 %v992, %v988
    %v1058 = vpack.c.bf16 %v1000, %v996
    %v1059 = vpack.c.bf16 %v1002, %v998
    %v1060 = vpack.c.bf16 %v1010, %v1006
    %v1061 = vpack.c.bf16 %v1012, %v1008
    %v1062 = vpack.c.bf16 %v1020, %v1016
    %v1063 = vpack.c.bf16 %v1022, %v1018
    %v1064 = vpack.c.bf16 %v1030, %v1026
    %v1065 = vpack.c.bf16 %v1032, %v1028
    %v1066 = vpack.c.bf16 %v1040, %v1036
    %v1067 = vpack.c.bf16 %v1042, %v1038
    %v1068 = vpack.c.bf16 %v1050, %v1046
    %v1069 = vpack.c.bf16 %v1052, %v1048
    %v1070 = vlaneseq
    %v1071 = vand.u32 %v1070, 127
    %v1072 = vld [vmem:[%s10] sm:$0xff]
    %v1073 = vld [vmem:[%s10 + $0x8] sm:$0xff]
    %v1074 = vld [vmem:[%s10 + $0x10] sm:$0xff]
    %v1075 = vld [vmem:[%s10 + $0x18] sm:$0xff]
    %1076 = vset.pattern.permute.xlu0 0
    %1077 = vperm.xlu0 %1076, %v1072
    %v1078 = vpop.permute.xlu0 %1077
    %1079 = vset.pattern.permute.xlu0 0
    %1080 = vperm.xlu0 %1079, %v1073
    %v1081 = vpop.permute.xlu0 %1080
    %1082 = vset.pattern.permute.xlu0 0
    %1083 = vperm.xlu0 %1082, %v1074
    %v1084 = vpop.permute.xlu0 %1083
    %1085 = vset.pattern.permute.xlu0 0
    %1086 = vperm.xlu0 %1085, %v1075
    %v1087 = vpop.permute.xlu0 %1086
    %vm1088 = vcmp.eq.s32.totalorder %v1071, %v1078
    %vm1089 = vcmp.eq.s32.totalorder %v1071, %v1081
    %vm1090 = vcmp.eq.s32.totalorder %v1071, %v1084
    %vm1091 = vcmp.eq.s32.totalorder %v1071, %v1087
    %v1092 = vsel %vm1088, 1.0, 0.0
    %v1093 = vsel %vm1089, 1.0, 0.0
    %v1094 = vsel %vm1090, 1.0, 0.0
    %v1095 = vsel %vm1091, 1.0, 0.0
    %v1096 = vpack.c.bf16 %v1093, %v1092
    %v1097 = vpack.c.bf16 %v1095, %v1094
    %v1098 = vld [vmem:[%s11] sm:$0xff]
    %v1099 = vld [vmem:[%s11 + $0x8] sm:$0xff]
    %v1100 = vld [vmem:[%s11 + $0x10] sm:$0xff]
    %v1101 = vld [vmem:[%s11 + $0x18] sm:$0xff]
    %1102 = vset.pattern.permute.xlu0 0
    %1103 = vperm.xlu0 %1102, %v1098
    %v1104 = vpop.permute.xlu0 %1103
    %1105 = vset.pattern.permute.xlu0 0
    %1106 = vperm.xlu0 %1105, %v1099
    %v1107 = vpop.permute.xlu0 %1106
    %1108 = vset.pattern.permute.xlu0 0
    %1109 = vperm.xlu0 %1108, %v1100
    %v1110 = vpop.permute.xlu0 %1109
    %1111 = vset.pattern.permute.xlu0 0
    %1112 = vperm.xlu0 %1111, %v1101
    %v1113 = vpop.permute.xlu0 %1112
    %vm1114 = vcmp.eq.s32.totalorder %v1071, %v1104
    %vm1115 = vcmp.eq.s32.totalorder %v1071, %v1107
    %vm1116 = vcmp.eq.s32.totalorder %v1071, %v1110
    %vm1117 = vcmp.eq.s32.totalorder %v1071, %v1113
    %v1118 = vsel %vm1114, 1.0, 0.0
    %v1119 = vsel %vm1115, 1.0, 0.0
    %v1120 = vsel %vm1116, 1.0, 0.0
    %v1121 = vsel %vm1117, 1.0, 0.0
    %v1122 = vpack.c.bf16 %v1119, %v1118
    %v1123 = vpack.c.bf16 %v1121, %v1120
    %1124 = vmatprep.subr.bf16.mxu0 0
    %1125 = vmatpush1.bf16.msra.mxu0 %v1055
    %1126 = vmatprep.subr.bf16.mxu0 0
    %1127 = vmatpush1.bf16.msra.mxu0 %v1057
    %1128 = vmatprep.subr.bf16.mxu0 0
    %1129 = vmatpush1.bf16.msra.mxu0 %v1059
    %1130 = vmatprep.subr.bf16.mxu0 0
    %1131 = vmatpush1.bf16.msra.mxu0 %v1061
    %1132 = vmatprep.subr.bf16.mxu0 0
    %1133 = vmatpush1.bf16.msra.mxu0 %v1063
    %1134 = vmatprep.subr.bf16.mxu0 0
    %1135 = vmatpush1.bf16.msra.mxu0 %v1065
    %1136 = vmatprep.subr.bf16.mxu0 0
    %1137 = vmatpush1.bf16.msra.mxu0 %v1067
    %1138 = vmatprep.subr.bf16.mxu0 0
    %1139 = vmatpush1.bf16.msra.mxu0 %v1069
    %1140 = vmatprep.subr.bf16.mxu0 0
    %1141 = vmatpush1.bf16.msra.mxu0 0
    %1142 = vmatprep.subr.bf16.mxu0 0
    %1143 = vmatpush1.bf16.msra.mxu0 0
    %1144 = vmatprep.subr.bf16.mxu0 0
    %1145 = vmatpush1.bf16.msra.mxu0 0
    %1146 = vmatprep.subr.bf16.mxu0 0
    %1147 = vmatpush1.bf16.msra.mxu0 0
    %1148 = vmatprep.subr.bf16.mxu0 0
    %1149 = vmatpush1.bf16.msra.mxu0 0
    %1150 = vmatprep.subr.bf16.mxu0 0
    %1151 = vmatpush1.bf16.msra.mxu0 0
    %1152 = vmatprep.subr.bf16.mxu0 0
    %1153 = vmatpush1.bf16.msra.mxu0 0
    %1154 = vmatprep.subr.bf16.mxu0 0
    %1155 = vmatpush1.bf16.msra.mxu0 0
    %1156 = vmatprep.mubr.bf16.mxu0 0
    %1157 = vmatmul.mubr.bf16.gmra.mrb[0].mxu0 %v1122
    %v1158 = vpop.f32.mrb[0].mxu0
    %v1159 = vadd.f32 0.0, %v1158
    %v1160 = vpop.f32.mrb[0].mxu0
    %v1161 = vpop.f32.mrb[0].mxu0
    %v1162 = vadd.f32 0.0, %v1161
    %v1163 = vpop.f32.mrb[0].mxu0
    %1164 = vmatprep.mubr.bf16.mxu0 0
    %1165 = vmatmul.mubr.bf16.gmra.mrb[0].mxu0 %v1123
    %v1166 = vpop.f32.mrb[0].mxu0
    %v1167 = vadd.f32 0.0, %v1166
    %v1168 = vpop.f32.mrb[0].mxu0
    %v1169 = vpop.f32.mrb[0].mxu0
    %v1170 = vadd.f32 0.0, %v1169
    %v1171 = vpop.f32.mrb[0].mxu0
    %1172 = vdwg.mxu0
    %1173 = vmatprep.subr.bf16.mxu0 0
    %1174 = vmatpush1.bf16.msra.mxu0 %v1054
    %1175 = vmatprep.subr.bf16.mxu0 0
    %1176 = vmatpush1.bf16.msra.mxu0 %v1056
    %1177 = vmatprep.subr.bf16.mxu0 0
    %1178 = vmatpush1.bf16.msra.mxu0 %v1058
    %1179 = vmatprep.subr.bf16.mxu0 0
    %1180 = vmatpush1.bf16.msra.mxu0 %v1060
    %1181 = vmatprep.subr.bf16.mxu0 0
    %1182 = vmatpush1.bf16.msra.mxu0 %v1062
    %1183 = vmatprep.subr.bf16.mxu0 0
    %1184 = vmatpush1.bf16.msra.mxu0 %v1064
    %1185 = vmatprep.subr.bf16.mxu0 0
    %1186 = vmatpush1.bf16.msra.mxu0 %v1066
    %1187 = vmatprep.subr.bf16.mxu0 0
    %1188 = vmatpush1.bf16.msra.mxu0 %v1068
    %1189 = vmatprep.subr.bf16.mxu0 0
    %1190 = vmatpush1.bf16.msra.mxu0 0
    %1191 = vmatprep.subr.bf16.mxu0 0
    %1192 = vmatpush1.bf16.msra.mxu0 0
    %1193 = vmatprep.subr.bf16.mxu0 0
    %1194 = vmatpush1.bf16.msra.mxu0 0
    %1195 = vmatprep.subr.bf16.mxu0 0
    %1196 = vmatpush1.bf16.msra.mxu0 0
    %1197 = vmatprep.subr.bf16.mxu0 0
    %1198 = vmatpush1.bf16.msra.mxu0 0
    %1199 = vmatprep.subr.bf16.mxu0 0
    %1200 = vmatpush1.bf16.msra.mxu0 0
    %1201 = vmatprep.subr.bf16.mxu0 0
    %1202 = vmatpush1.bf16.msra.mxu0 0
    %1203 = vmatprep.subr.bf16.mxu0 0
    %1204 = vmatpush1.bf16.msra.mxu0 0
    %1205 = vmatprep.mubr.bf16.mxu0 0
    %1206 = vmatmul.mubr.bf16.gmra.mrb[0].mxu0 %v1096
    %v1207 = vpop.f32.mrb[0].mxu0
    %v1208 = vadd.f32 %v1159, %v1207
    %v1209 = vpop.f32.mrb[0].mxu0
    %v1210 = vpop.f32.mrb[0].mxu0
    %v1211 = vadd.f32 %v1162, %v1210
    %v1212 = vpop.f32.mrb[0].mxu0
    %1213 = vmatprep.mubr.bf16.mxu0 0
    %1214 = vmatmul.mubr.bf16.gmra.mrb[0].mxu0 %v1097
    %v1215 = vpop.f32.mrb[0].mxu0
    %v1216 = vadd.f32 %v1167, %v1215
    %v1217 = vpop.f32.mrb[0].mxu0
    %v1218 = vpop.f32.mrb[0].mxu0
    %v1219 = vadd.f32 %v1170, %v1218
    %v1220 = vpop.f32.mrb[0].mxu0
    %1221 = vdwg.mxu0
    %v1222 = vmax.f32 %v1208, 0.0
    %v1223 = vmax.f32 %v1211, 0.0
    %v1224 = vmax.f32 %v1216, 0.0
    %v1225 = vmax.f32 %v1219, 0.0
    %v1226 = vpack.c.bf16 %v1223, %v1222
    %v1227 = vpack.c.bf16 %v1225, %v1224
    %v1228 = vld [vmem:[#allocation10] sm:$0xf]
    %v1229 = vld [vmem:[#allocation10 + $0x4] sm:$0xf]
    %v1230 = vld [vmem:[#allocation10 + $0x8] sm:$0xf]
    %v1231 = vld [vmem:[#allocation10 + $0xc] sm:$0xf]
    %v1232 = vld [vmem:[#allocation10 + $0x10] sm:$0xf]
    %v1233 = vld [vmem:[#allocation10 + $0x14] sm:$0xf]
    %v1234 = vld [vmem:[#allocation10 + $0x18] sm:$0xf]
    %v1235 = vld [vmem:[#allocation10 + $0x1c] sm:$0xf]
    %v1236 = vld [vmem:[#allocation10 + $0x20] sm:$0xf]
    %v1237 = vld [vmem:[#allocation10 + $0x24] sm:$0xf]
    %v1238 = vld [vmem:[#allocation10 + $0x28] sm:$0xf]
    %v1239 = vld [vmem:[#allocation10 + $0x2c] sm:$0xf]
    %v1240 = vld [vmem:[#allocation10 + $0x30] sm:$0xf]
    %v1241 = vld [vmem:[#allocation10 + $0x34] sm:$0xf]
    %v1242 = vld [vmem:[#allocation10 + $0x38] sm:$0xf]
    %v1243 = vld [vmem:[#allocation10 + $0x3c] sm:$0xf]
    %v1244 = vld [vmem:[%s9] sm:$0x1]
    %v1246 = vlaneseq
    %v1247 = vshrl.u32 %v1246, 7
    %v1248 = vsub.s32 0, %v1247
    %v1249 = vrot.slane %v1244, %v1248
    %v1267 = vunpack.c.l.b16 %v1228
    %v1268 = vunpack.c.l.b16 %v1229
    %v1269 = vunpack.c.l.b16 %v1230
    %v1270 = vunpack.c.l.b16 %v1231
    %v1271 = vunpack.c.l.b16 %v1232
    %v1272 = vunpack.c.l.b16 %v1233
    %v1273 = vunpack.c.l.b16 %v1234
    %v1274 = vunpack.c.l.b16 %v1235
    %v1275 = vunpack.c.l.b16 %v1236
    %v1276 = vunpack.c.l.b16 %v1237
    %v1277 = vunpack.c.l.b16 %v1238
    %v1278 = vunpack.c.l.b16 %v1239
    %v1279 = vunpack.c.l.b16 %v1240
    %v1280 = vunpack.c.l.b16 %v1241
    %v1281 = vunpack.c.l.b16 %v1242
    %v1282 = vunpack.c.l.b16 %v1243
    %v1283 = vpack.c.b16 %v1268, %v1267
    %v1284 = vpack.c.b16 %v1270, %v1269
    %v1285 = vpack.c.b16 %v1272, %v1271
    %v1286 = vpack.c.b16 %v1274, %v1273
    %v1287 = vpack.c.b16 %v1276, %v1275
    %v1288 = vpack.c.b16 %v1278, %v1277
    %v1289 = vpack.c.b16 %v1280, %v1279
    %v1290 = vpack.c.b16 %v1282, %v1281
    %1299 = vmatprep.subr.bf16.mxu0 0
    %1300 = vmatpush1.bf16.msra.mxu0 %v1283
    %1301 = vmatprep.subr.bf16.mxu0 0
    %1302 = vmatpush1.bf16.msra.mxu0 %v1284
    %1303 = vmatprep.subr.bf16.mxu0 0
    %1304 = vmatpush1.bf16.msra.mxu0 %v1285
    %1305 = vmatprep.subr.bf16.mxu0 0
    %1306 = vmatpush1.bf16.msra.mxu0 %v1286
    %1307 = vmatprep.subr.bf16.mxu0 0
    %1308 = vmatpush1.bf16.msra.mxu0 %v1287
    %1309 = vmatprep.subr.bf16.mxu0 0
    %1310 = vmatpush1.bf16.msra.mxu0 %v1288
    %1311 = vmatprep.subr.bf16.mxu0 0
    %1312 = vmatpush1.bf16.msra.mxu0 %v1289
    %1313 = vmatprep.subr.bf16.mxu0 0
    %1314 = vmatpush1.bf16.msra.mxu0 %v1290
    %1315 = vmatprep.subr.bf16.mxu0 0
    %1316 = vmatpush1.bf16.msra.mxu0 0
    %1317 = vmatprep.subr.bf16.mxu0 0
    %1318 = vmatpush1.bf16.msra.mxu0 0
    %1319 = vmatprep.subr.bf16.mxu0 0
    %1320 = vmatpush1.bf16.msra.mxu0 0
    %1321 = vmatprep.subr.bf16.mxu0 0
    %1322 = vmatpush1.bf16.msra.mxu0 0
    %1323 = vmatprep.subr.bf16.mxu0 0
    %1324 = vmatpush1.bf16.msra.mxu0 0
    %1325 = vmatprep.subr.bf16.mxu0 0
    %1326 = vmatpush1.bf16.msra.mxu0 0
    %1327 = vmatprep.subr.bf16.mxu0 0
    %1328 = vmatpush1.bf16.msra.mxu0 0
    %1329 = vmatprep.subr.bf16.mxu0 0
    %1330 = vmatpush1.bf16.msra.mxu0 0
    %1331 = vmatprep.mubr.bf16.mxu0 0
    %1332 = vmatmul.mubr.bf16.gmra.mrb[0].mxu0 %v1226
    %v1333 = vpop.f32.mrb[0].mxu0
    %v1334 = vadd.f32 %v1249, %v1333
    %v1335 = vpop.f32.mrb[0].mxu0
    %v1336 = vpop.f32.mrb[0].mxu0
    %v1337 = vadd.f32 %v1249, %v1336
    %v1338 = vpop.f32.mrb[0].mxu0
    %1339 = vmatprep.mubr.bf16.mxu0 0
    %1340 = vmatmul.mubr.bf16.gmra.mrb[0].mxu0 %v1227
    %v1341 = vpop.f32.mrb[0].mxu0
    %v1342 = vadd.f32 %v1249, %v1341
    %v1343 = vpop.f32.mrb[0].mxu0
    %v1344 = vpop.f32.mrb[0].mxu0
    %v1345 = vadd.f32 %v1249, %v1344
    %v1346 = vpop.f32.mrb[0].mxu0
    %1347 = vdwg.mxu0
    %1348 = vmax.xlane.f32.xlu0 %v1334
    %v1349 = vpop.xlane.xlu0 %1348
    %1350 = vmax.xlane.f32.xlu0 %v1337
    %v1351 = vpop.xlane.xlu0 %1350
    %1352 = vmax.xlane.f32.xlu0 %v1342
    %v1353 = vpop.xlane.xlu0 %1352
    %1354 = vmax.xlane.f32.xlu0 %v1345
    %v1355 = vpop.xlane.xlu0 %1354
    %v1356 = vsub.f32 %v1334, %v1349
    %v1357 = vsub.f32 %v1337, %v1351
    %v1358 = vsub.f32 %v1342, %v1353
    %v1359 = vsub.f32 %v1345, %v1355
    %v1360 = vmul.f32 %v1356, 1.442695
    %v1361 = vpow.pop %v1360
    %v1362 = vmul.f32 %v1357, 1.442695
    %v1363 = vpow.pop %v1362
    %v1364 = vmul.f32 %v1358, 1.442695
    %v1365 = vpow.pop %v1364
    %v1366 = vmul.f32 %v1359, 1.442695
    %v1367 = vpow.pop %v1366
    %1368 = vadd.xlane.f32.xlu0 %v1361
    %v1369 = vpop.xlane.xlu0 %1368
    %1370 = vadd.xlane.f32.xlu0 %v1363
    %v1371 = vpop.xlane.xlu0 %1370
    %1372 = vadd.xlane.f32.xlu0 %v1365
    %v1373 = vpop.xlane.xlu0 %1372
    %1374 = vadd.xlane.f32.xlu0 %v1367
    %v1375 = vpop.xlane.xlu0 %1374
    %v1376 = vlog2.pop %v1369
    %v1377 = vmul.f32 %v1376, 0.6931472
    %v1378 = vlog2.pop %v1371
    %v1379 = vmul.f32 %v1378, 0.6931472
    %v1380 = vlog2.pop %v1373
    %v1381 = vmul.f32 %v1380, 0.6931472
    %v1382 = vlog2.pop %v1375
    %v1383 = vmul.f32 %v1382, 0.6931472
    %v1384 = vsub.f32 %v1356, %v1377
    %v1385 = vsub.f32 %v1357, %v1379
    %v1386 = vsub.f32 %v1358, %v1381
    %v1387 = vsub.f32 %v1359, %v1383
    %1388 = vst [vmem:[#allocation11] sm:$0xff] %v1384
    %1389 = vst [vmem:[#allocation11 + $0x8] sm:$0xff] %v1385
    %1390 = vst [vmem:[#allocation11 + $0x10] sm:$0xff] %v1386
    %1391 = vst [vmem:[#allocation11 + $0x18] sm:$0xff] %v1387
    // Predicated region
    $region70: #{tpu_custom_call.1} parent=1 // pred_check
      _
    $region71: #{tpu_custom_call.1} parent=1 // pred_check_branch
      %1393 = sbr.rel (0) target = $region73
    $region72: #{tpu_custom_call.1} parent=1 // pred_region
      %s1395 = ssub.s32 512, 512
      %1396 = vsyncadd [#allocation4], %s1395
      %s1397 = sshll.u32 [#allocation11], 4
      %s1398 = int_to_ptr.vmem [resolvable:$true] %s1397
      %1403 = dma.vmem_to_hbm [thread:$0]  %s1398, 512, %s12, [#allocation4], 128, 128, 8
    $region73: #{tpu_custom_call.1} parent=1 // pred_fallthru
      _
    // Predicated region
    $region74: #{tpu_custom_call.1} parent=1 // pred_check
      _
    $region75: #{tpu_custom_call.1} parent=1 // pred_check_branch
      %1405 = sbr.rel (0) target = $region77
    $region76: #{tpu_custom_call.1} parent=1 // pred_region
      %1406 = dma.done [#allocation4], 512
    $region77: #{tpu_custom_call.1} parent=1 // pred_fallthru
      _
    %1407 = vsyncpa [#allocation3], 1
    %1408 = vsyncpa [#allocation6], 1
    %1409 = vsyncpa [#allocation9], 1
    %1410 = vsyncpa [#allocation4], 1

</llo_original>
